<compile_context>
chip_gen: v7x
topology: tpu7x:2x2x1
jax: 0.10.0
libtpu: 0.0.40
codegen_flags: <defaults>
</compile_context>

<pallas_src>
import functools

import jax
import jax.numpy as jnp
from jax import lax
from jax.experimental import pallas as pl
from jax.experimental.pallas import tpu as pltpu

NEG_INF = -1e9
LN_EPS = 1e-6
VMEM_LIMIT = 32 * 1024 * 1024  # safe on v5e/v6e/v7x; demo needs far less


def _pick_tile(n, target=256):
    """Largest tile <= target that divides n (multiple-of-8 preferred); full n for small."""
    if n <= target:
        return n
    t = target
    while t >= 8:
        if n % t == 0:
            return t
        t //= 2
    return n


# ----------------------------------------------------------------------------
# Multi-head attention block kernel (one grid step = one (batch, q-tile))
# ----------------------------------------------------------------------------
def _mha_kernel(xq_ref, xkv_ref, wq_ref, wk_ref, wv_ref, wfc_ref,
                ln_g_ref, ln_b_ref, keep_ref, pad_ref, *rest,
                causal, use_rel_bias):
    if use_rel_bias:
        relb_ref, out_ref, attn_ref = rest
    else:
        out_ref, attn_ref = rest

    n_head = wq_ref.shape[0]
    d_k = wq_ref.shape[2]

    xq = xq_ref[...]                                  # (tq, d_model) f32
    tq, d_model = xq.shape
    xq_b = xq.astype(jnp.bfloat16)
    xkv_b = xkv_ref[...].astype(jnp.bfloat16)         # (Lk, d_model)
    Lk = xkv_b.shape[0]

    # Attention mask rebuilt in-kernel: key-keep row (+ causal iota). No mask DMA.
    keep_ok = keep_ref[...] > 0.0                     # (1, Lk) -> broadcasts over rows
    if causal:
        q_pos = pl.program_id(1) * tq + lax.broadcasted_iota(jnp.int32, (tq, Lk), 0)
        k_pos = lax.broadcasted_iota(jnp.int32, (tq, Lk), 1)
        allowed = keep_ok & (k_pos <= q_pos)          # (tq, Lk)
    else:
        allowed = keep_ok                             # (1, Lk)

    inv_temp = 1.0 / (d_k ** 0.5)
    acc = jnp.zeros((tq, d_model), jnp.float32)       # sum of per-head output projections

    # Static unroll over heads; per-head weights come from leading-axis (sublane-major)
    # indexing of head-major stacked weights -> no lane-dim slicing, no concat/relayout.
    for h in range(n_head):
        qh = jnp.dot(xq_b, wq_ref[h], preferred_element_type=jnp.float32) * inv_temp
        kh = jnp.dot(xkv_b, wk_ref[h], preferred_element_type=jnp.float32)
        vh = jnp.dot(xkv_b, wv_ref[h], preferred_element_type=jnp.float32)

        # q @ k^T expressed with contracting dims (no explicit transpose op)
        s = lax.dot_general(qh.astype(jnp.bfloat16), kh.astype(jnp.bfloat16),
                            (((1,), (1,)), ((), ())),
                            preferred_element_type=jnp.float32)        # (tq, Lk)
        if use_rel_bias:
            s = s + relb_ref[h]
        s = jnp.where(allowed, s, NEG_INF)

        m = jnp.max(s, axis=-1, keepdims=True)
        e = jnp.exp(s - m)
        p = e * pl.reciprocal(jnp.sum(e, axis=-1, keepdims=True), approx=True)
        attn_ref[h] = p                                                # (tq, Lk)

        ctx = jnp.dot(p.astype(jnp.bfloat16), vh.astype(jnp.bfloat16),
                      preferred_element_type=jnp.float32)              # (tq, d_v)
        acc = acc + jnp.dot(ctx.astype(jnp.bfloat16), wfc_ref[h],
                            preferred_element_type=jnp.float32)        # (tq, d_model)

    o = acc + xq                                                       # residual (f32)
    mu = jnp.mean(o, axis=-1, keepdims=True)                           # LayerNorm(eps=1e-6)
    var = jnp.mean((o - mu) ** 2, axis=-1, keepdims=True)
    o = (o - mu) * lax.rsqrt(var + LN_EPS) * ln_g_ref[...] + ln_b_ref[...]
    o = jnp.where(pad_ref[...] != 0.0, 0.0, o)                         # masked_fill(pad, 0)
    out_ref[...] = o


def mha_block(xq, xkv, p, key_keep, pad_f, *, rel_bias, causal,
              n_head, d_k, d_v, block_q=256):
    B, Lq, d_model = xq.shape
    Lk = xkv.shape[1]
    tq = _pick_tile(Lq, block_q)
    n_qt = Lq // tq
    use_rel = rel_bias is not None

    kernel = functools.partial(_mha_kernel, causal=causal, use_rel_bias=use_rel)

    def rep(shape):  # grid-invariant block (weights / LN params): DMA'd once, stays resident
        nd = len(shape)
        return pl.BlockSpec(shape, lambda b, qi: (0,) * nd)

    in_specs = [
        pl.BlockSpec((None, tq, d_model), lambda b, qi: (b, qi, 0)),   # xq tile
        pl.BlockSpec((None, Lk, d_model), lambda b, qi: (b, 0, 0)),    # xkv (per batch)
        rep((n_head, d_model, d_k)),                                   # wq (head-major)
        rep((n_head, d_model, d_k)),                                   # wk
        rep((n_head, d_model, d_v)),                                   # wv
        rep((n_head, d_v, d_model)),                                   # wfc
        rep((1, d_model)),                                             # LN gamma
        rep((1, d_model)),                                             # LN beta
        pl.BlockSpec((None, 1, Lk), lambda b, qi: (b, 0, 0)),          # key-keep row
        pl.BlockSpec((None, tq, 1), lambda b, qi: (b, qi, 0)),         # pad column
    ]
    inputs = [xq, xkv, p["wq"], p["wk"], p["wv"], p["wfc"],
              p["ln_g"], p["ln_b"], key_keep, pad_f]
    if use_rel:
        in_specs.append(pl.BlockSpec((n_head, tq, Lk), lambda b, qi: (0, qi, 0)))
        inputs.append(rel_bias)

    out, attn = pl.pallas_call(
        kernel,
        out_shape=(jax.ShapeDtypeStruct((B, Lq, d_model), jnp.float32),
                   jax.ShapeDtypeStruct((B, n_head, Lq, Lk), jnp.float32)),
        grid=(B, n_qt),
        in_specs=in_specs,
        out_specs=(pl.BlockSpec((None, tq, d_model), lambda b, qi: (b, qi, 0)),
                   pl.BlockSpec((None, n_head, tq, Lk), lambda b, qi: (b, 0, qi, 0))),
        compiler_params=pltpu.CompilerParams(
            dimension_semantics=("parallel", "parallel"),
            vmem_limit_bytes=VMEM_LIMIT),
    )(*inputs)
    return out, attn


# ----------------------------------------------------------------------------
# Position-wise feed-forward kernel (fuses optional "+ base_output; masked_fill")
# ----------------------------------------------------------------------------
def _ffn_kernel(x_ref, *rest, has_base):
    if has_base:
        (base_ref, w1_ref, b1_ref, w2_ref, b2_ref,
         g_ref, bb_ref, pad_ref, out_ref) = rest
    else:
        base_ref = None
        (w1_ref, b1_ref, w2_ref, b2_ref, g_ref, bb_ref, pad_ref, out_ref) = rest

    x = x_ref[...]                                    # (tl, d_model) f32
    pad = pad_ref[...]                                # (tl, 1)
    if has_base:
        x = jnp.where(pad != 0.0, 0.0, x + base_ref[...])   # fused base add + masked_fill

    h = jnp.dot(x.astype(jnp.bfloat16), w1_ref[...],
                preferred_element_type=jnp.float32) + b1_ref[...]
    h = jnp.maximum(h, 0.0)                           # ReLU
    y = jnp.dot(h.astype(jnp.bfloat16), w2_ref[...],
                preferred_element_type=jnp.float32) + b2_ref[...]
    y = y + x                                         # residual
    mu = jnp.mean(y, axis=-1, keepdims=True)
    var = jnp.mean((y - mu) ** 2, axis=-1, keepdims=True)
    y = (y - mu) * lax.rsqrt(var + LN_EPS) * g_ref[...] + bb_ref[...]
    y = jnp.where(pad != 0.0, 0.0, y)                 # masked_fill(pad_mask, 0.0)
    out_ref[...] = y


def ffn_block(x, base, p, pad_f, *, block_l=256):
    # TODO(synk): for very large d_inner, additionally tile d_inner with a VMEM f32
    # accumulator; not needed at these sizes.
    B, L, d_model = x.shape
    d_inner = p["w1"].shape[1]
    tl = _pick_tile(L, block_l)
    n_lt = L // tl
    has_base = base is not None
    kernel = functools.partial(_ffn_kernel, has_base=has_base)

    in_specs = [pl.BlockSpec((None, tl, d_model), lambda b, li: (b, li, 0))]
    inputs = [x]
    if has_base:
        in_specs.append(pl.BlockSpec((None, tl, d_model), lambda b, li: (b, li, 0)))
        inputs.append(base)
    in_specs += [
        pl.BlockSpec((d_model, d_inner), lambda b, li: (0, 0)),
        pl.BlockSpec((1, d_inner), lambda b, li: (0, 0)),
        pl.BlockSpec((d_inner, d_model), lambda b, li: (0, 0)),
        pl.BlockSpec((1, d_model), lambda b, li: (0, 0)),
        pl.BlockSpec((1, d_model), lambda b, li: (0, 0)),
        pl.BlockSpec((1, d_model), lambda b, li: (0, 0)),
        pl.BlockSpec((None, tl, 1), lambda b, li: (b, li, 0)),
    ]
    inputs += [p["w1"], p["b1"], p["w2"], p["b2"], p["ln_g"], p["ln_b"], pad_f]

    return pl.pallas_call(
        kernel,
        out_shape=jax.ShapeDtypeStruct((B, L, d_model), jnp.float32),
        grid=(B, n_lt),
        in_specs=in_specs,
        out_specs=pl.BlockSpec((None, tl, d_model), lambda b, li: (b, li, 0)),
        compiler_params=pltpu.CompilerParams(
            dimension_semantics=("parallel", "parallel"),
            vmem_limit_bytes=VMEM_LIMIT),
    )(*inputs)


# ----------------------------------------------------------------------------
# Parameter init + forward of MultiDecoderLayer
# ----------------------------------------------------------------------------
def init_params(key, n_encs, len_q, d_model, d_inner, n_head, d_k, d_v):
    def head_lin(k, fi, fo):  # head-major stacked weights, stored bf16 for MXU + half DMA
        return (0.02 * jax.random.normal(k, (n_head, fi, fo), jnp.float32)).astype(jnp.bfloat16)

    def lin(k, fi, fo):
        return (0.02 * jax.random.normal(k, (fi, fo), jnp.float32)).astype(jnp.bfloat16)

    keys = jax.random.split(key, 8 + 5 * (n_encs + 1))
    ki = iter(keys)

    def mha_params(relative):
        p = {
            "wq": head_lin(next(ki), d_model, d_k),
            "wk": head_lin(next(ki), d_model, d_k),
            "wv": head_lin(next(ki), d_model, d_v),
            "wfc": head_lin(next(ki), d_v, d_model),
            "ln_g": jnp.ones((1, d_model), jnp.float32),
            "ln_b": jnp.zeros((1, d_model), jnp.float32),
        }
        if relative:
            # TODO(synk): source of the "relative" MultiHeadAttention variant was not
            # provided; implemented as a learned per-head relative-position bias added
            # to the attention logits (Shaw/T5-style), table size (n_head, 2*len_q-1).
            p["rel_table"] = 0.02 * jax.random.normal(
                next(ki), (n_head, 2 * len_q - 1), jnp.float32)
        return p

    return {
        "slf": mha_params(relative=True),
        "encs": [mha_params(relative=False) for _ in range(n_encs)],
        "ffn": {
            "w1": lin(next(ki), d_model, d_inner),
            "b1": jnp.zeros((1, d_inner), jnp.float32),
            "w2": lin(next(ki), d_inner, d_model),
            "b2": jnp.zeros((1, d_model), jnp.float32),
            "ln_g": jnp.ones((1, d_model), jnp.float32),
            "ln_b": jnp.zeros((1, d_model), jnp.float32),
        },
    }


def multi_decoder_layer(params, dec_input, encs_output, base_output=None,
                        pad_mask=None, dec_key_keep=None, enc_key_keeps=None,
                        *, len_q, n_head, d_k, d_v, causal=True):
    # TODO(synk): arbitrary dense (B, Lq, Lk) attention masks are not streamed to the
    # kernels; masks are rebuilt in-kernel from key-keep vectors + a causal flag
    # (the standard usage of this module), per the performance review.
    assert len(params["encs"]) == len(encs_output)
    B, L, _ = dec_input.shape

    pad_f = (jnp.zeros((B, L, 1), jnp.float32) if pad_mask is None
             else pad_mask.astype(jnp.float32).reshape(B, L, 1))
    if dec_key_keep is None:
        dec_key_keep = jnp.ones((B, L), jnp.float32)
    dec_keep3 = dec_key_keep.astype(jnp.float32).reshape(B, 1, L)

    # self-attention (relative=True): gather relative-position bias table -> (H, L, L)
    rel_idx = jnp.clip(jnp.arange(L)[None, :] - jnp.arange(L)[:, None] + (len_q - 1),
                       0, 2 * len_q - 2)
    rel_bias = params["slf"]["rel_table"][:, rel_idx]

    p = params["slf"]
    dec_output, dec_slf_attn = mha_block(
        dec_input, dec_input, p, dec_keep3, pad_f, rel_bias=rel_bias,
        causal=causal, n_head=n_head, d_k=d_k, d_v=d_v)

    # cross-attentions over each encoder output (relative=False, non-causal)
    dec_encs_attn = []
    for i, enc_out in enumerate(encs_output):
        Lk = enc_out.shape[1]
        keep = (enc_key_keeps[i] if enc_key_keeps is not None
                else jnp.ones((B, Lk), jnp.float32))
        keep3 = keep.astype(jnp.float32).reshape(B, 1, Lk)
        pe = params["encs"][i]
        dec_output, a = mha_block(
            dec_output, enc_out, pe, keep3, pad_f, rel_bias=None,
            causal=False, n_head=n_head, d_k=d_k, d_v=d_v)
        dec_encs_attn.append(a)

    # FFN (base_output add + masked_fill fused into the kernel)
    pf = params["ffn"]
    dec_output = ffn_block(dec_output, base_output, pf, pad_f)
    return dec_output, dec_slf_attn, dec_encs_attn


# ----------------------------------------------------------------------------
if __name__ == "__main__":
    n_encs, len_q, d_model, d_inner, n_head, d_k, d_v = 2, 8, 32, 64, 4, 8, 8
    B, L = 2, len_q

    key = jax.random.PRNGKey(0)
    kp, kx, ke, kb = jax.random.split(key, 4)
    params = init_params(kp, n_encs, len_q, d_model, d_inner, n_head, d_k, d_v)

    dec_input = jax.random.normal(kx, (B, L, d_model), jnp.float32)
    encs_output = [jax.random.normal(jax.random.fold_in(ke, i), (B, L, d_model), jnp.float32)
                   for i in range(n_encs)]
    base_output = jax.random.normal(kb, (B, L, d_model), jnp.float32)

    # pad_mask: True where position is padding (batch 1 has 2 padded tail positions)
    valid_len = jnp.array([L, L - 2])
    pos = jnp.arange(L)[None, :]
    pad_mask = (pos >= valid_len[:, None])[..., None]             # (B, L, 1) bool
    key_keep = (pos < valid_len[:, None]).astype(jnp.float32)     # (B, L) 1.0 = real key

    dec_out, slf_attn, encs_attn = multi_decoder_layer(
        params, dec_input, encs_output, base_output, pad_mask,
        dec_key_keep=key_keep, enc_key_keeps=[key_keep] * n_encs,
        len_q=len_q, n_head=n_head, d_k=d_k, d_v=d_v, causal=True)

    jax.block_until_ready(dec_out)
    jax.block_until_ready(slf_attn)
    for a in encs_attn:
        jax.block_until_ready(a)

    assert dec_out.shape == (B, L, d_model)
    assert slf_attn.shape == (B, n_head, L, L)
    for a in encs_attn:
        assert a.shape == (B, n_head, L, L)
    # padded decoder rows must be exactly zeroed by masked_fill
    assert bool(jnp.all(dec_out[1, L - 2:] == 0.0))
    print("KERNEL_OK")
</pallas_src>

<mosaic_0001>
module attributes {stable_mosaic.version = 11 : i64} {
  func.func @_mha_kernel(%arg0: i32, %arg1: i32, %arg2: memref<1x8x32xf32, #tpu.memory_space<vmem>>, %arg3: memref<1x8x32xf32, #tpu.memory_space<vmem>>, %arg4: memref<4x32x8xbf16, #tpu.memory_space<vmem>>, %arg5: memref<4x32x8xbf16, #tpu.memory_space<vmem>>, %arg6: memref<4x32x8xbf16, #tpu.memory_space<vmem>>, %arg7: memref<4x8x32xbf16, #tpu.memory_space<vmem>>, %arg8: memref<1x32xf32, #tpu.memory_space<vmem>>, %arg9: memref<1x32xf32, #tpu.memory_space<vmem>>, %arg10: memref<1x1x8xf32, #tpu.memory_space<vmem>>, %arg11: memref<1x8x1xf32, #tpu.memory_space<vmem>>, %arg12: memref<4x8x8xf32, #tpu.memory_space<vmem>>, %arg13: memref<1x8x32xf32, #tpu.memory_space<vmem>>, %arg14: memref<1x4x8x8xf32, #tpu.memory_space<vmem>>) attributes {dimension_semantics = [#tpu.dimension_semantics<parallel>, #tpu.dimension_semantics<parallel>], iteration_bounds = array<i64: 2, 1>, scalar_prefetch = 0 : i64, scratch_operands = 0 : i64, tpu.core_type = #tpu.core_type<tc>, window_params = [{transform_indices = @transform_0, window_bounds = array<i64: 1, 8, 32>}, {transform_indices = @transform_1, window_bounds = array<i64: 1, 8, 32>}, {pipeline_mode = #tpu.pipeline_mode<synchronous>, transform_indices = @transform_2, window_bounds = array<i64: 4, 32, 8>}, {pipeline_mode = #tpu.pipeline_mode<synchronous>, transform_indices = @transform_3, window_bounds = array<i64: 4, 32, 8>}, {pipeline_mode = #tpu.pipeline_mode<synchronous>, transform_indices = @transform_4, window_bounds = array<i64: 4, 32, 8>}, {pipeline_mode = #tpu.pipeline_mode<synchronous>, transform_indices = @transform_5, window_bounds = array<i64: 4, 8, 32>}, {pipeline_mode = #tpu.pipeline_mode<synchronous>, transform_indices = @transform_6, window_bounds = array<i64: 1, 32>}, {pipeline_mode = #tpu.pipeline_mode<synchronous>, transform_indices = @transform_7, window_bounds = array<i64: 1, 32>}, {transform_indices = @transform_8, window_bounds = array<i64: 1, 1, 8>}, {transform_indices = @transform_9, window_bounds = array<i64: 1, 8, 1>}, {transform_indices = @transform_10, window_bounds = array<i64: 4, 8, 8>}, {transform_indices = @transform_11, window_bounds = array<i64: 1, 8, 32>}, {transform_indices = @transform_12, window_bounds = array<i64: 1, 4, 8, 8>}]} {
    %c0 = arith.constant 0 : index
    %c0_0 = arith.constant 0 : index
    %c0_1 = arith.constant 0 : index
    %0 = vector.load %arg2[%c0, %c0_0, %c0_1] : memref<1x8x32xf32, #tpu.memory_space<vmem>>, vector<1x8x32xf32>
    %1 = vector.shape_cast %0 : vector<1x8x32xf32> to vector<8x32xf32>
    %2 = arith.truncf %1 : vector<8x32xf32> to vector<8x32xbf16>
    %c0_2 = arith.constant 0 : index
    %c0_3 = arith.constant 0 : index
    %c0_4 = arith.constant 0 : index
    %3 = vector.load %arg3[%c0_2, %c0_3, %c0_4] : memref<1x8x32xf32, #tpu.memory_space<vmem>>, vector<1x8x32xf32>
    %4 = vector.shape_cast %3 : vector<1x8x32xf32> to vector<8x32xf32>
    %5 = arith.truncf %4 : vector<8x32xf32> to vector<8x32xbf16>
    %c0_5 = arith.constant 0 : index
    %c0_6 = arith.constant 0 : index
    %c0_7 = arith.constant 0 : index
    %6 = vector.load %arg10[%c0_5, %c0_6, %c0_7] : memref<1x1x8xf32, #tpu.memory_space<vmem>>, vector<1x1x8xf32>
    %7 = vector.shape_cast %6 : vector<1x1x8xf32> to vector<1x8xf32>
    %cst = arith.constant 0.000000e+00 : f32
    %8 = vector.broadcast %cst : f32 to vector<1x8xf32>
    %9 = arith.cmpf ogt, %7, %8 : vector<1x8xf32>
    %c8_i32 = arith.constant 8 : i32
    %10 = arith.muli %arg1, %c8_i32 : i32
    %11 = tpu.iota {dimensions = array<i32: 0>} : vector<8x8xi32>
    %12 = vector.broadcast %10 : i32 to vector<8x8xi32>
    %13 = arith.addi %12, %11 : vector<8x8xi32>
    %14 = tpu.iota {dimensions = array<i32: 1>} : vector<8x8xi32>
    %15 = arith.cmpi sle, %14, %13 : vector<8x8xi32>
    %16 = vector.broadcast %9 : vector<1x8xi1> to vector<8x8xi1>
    %17 = arith.andi %16, %15 : vector<8x8xi1>
    %cst_8 = arith.constant 0.000000e+00 : f32
    %18 = vector.broadcast %cst_8 : f32 to vector<8x32xf32>
    %c0_9 = arith.constant 0 : index
    %c0_10 = arith.constant 0 : index
    %c0_11 = arith.constant 0 : index
    %19 = vector.load %arg4[%c0_9, %c0_10, %c0_11] : memref<4x32x8xbf16, #tpu.memory_space<vmem>>, vector<1x32x8xbf16>
    %20 = vector.shape_cast %19 : vector<1x32x8xbf16> to vector<32x8xbf16>
    %cst_12 = arith.constant dense<0.000000e+00> : vector<8x8xf32>
    %21 = tpu.matmul %2, %20, %cst_12 {dimension_numbers = #tpu.dot_dimension_numbers<[1], [0], [0], [1], [0, 0, 1, 1], [], []>} : vector<8x32xbf16>, vector<32x8xbf16>, vector<8x8xf32> -> vector<8x8xf32>
    %cst_13 = arith.constant 0.353553385 : f32
    %22 = vector.broadcast %cst_13 : f32 to vector<8x8xf32>
    %23 = arith.mulf %21, %22 : vector<8x8xf32>
    %c0_14 = arith.constant 0 : index
    %c0_15 = arith.constant 0 : index
    %c0_16 = arith.constant 0 : index
    %24 = vector.load %arg5[%c0_14, %c0_15, %c0_16] : memref<4x32x8xbf16, #tpu.memory_space<vmem>>, vector<1x32x8xbf16>
    %25 = vector.shape_cast %24 : vector<1x32x8xbf16> to vector<32x8xbf16>
    %cst_17 = arith.constant dense<0.000000e+00> : vector<8x8xf32>
    %26 = tpu.matmul %5, %25, %cst_17 {dimension_numbers = #tpu.dot_dimension_numbers<[1], [0], [0], [1], [0, 0, 1, 1], [], []>} : vector<8x32xbf16>, vector<32x8xbf16>, vector<8x8xf32> -> vector<8x8xf32>
    %c0_18 = arith.constant 0 : index
    %c0_19 = arith.constant 0 : index
    %c0_20 = arith.constant 0 : index
    %27 = vector.load %arg6[%c0_18, %c0_19, %c0_20] : memref<4x32x8xbf16, #tpu.memory_space<vmem>>, vector<1x32x8xbf16>
    %28 = vector.shape_cast %27 : vector<1x32x8xbf16> to vector<32x8xbf16>
    %cst_21 = arith.constant dense<0.000000e+00> : vector<8x8xf32>
    %29 = tpu.matmul %5, %28, %cst_21 {dimension_numbers = #tpu.dot_dimension_numbers<[1], [0], [0], [1], [0, 0, 1, 1], [], []>} : vector<8x32xbf16>, vector<32x8xbf16>, vector<8x8xf32> -> vector<8x8xf32>
    %30 = arith.truncf %23 : vector<8x8xf32> to vector<8x8xbf16>
    %31 = arith.truncf %26 : vector<8x8xf32> to vector<8x8xbf16>
    %cst_22 = arith.constant dense<0.000000e+00> : vector<8x8xf32>
    %32 = tpu.matmul %30, %31, %cst_22 {dimension_numbers = #tpu.dot_dimension_numbers<[1], [1], [0], [0], [0, 0, 1, 0], [], []>} : vector<8x8xbf16>, vector<8x8xbf16>, vector<8x8xf32> -> vector<8x8xf32>
    %c0_23 = arith.constant 0 : index
    %c0_24 = arith.constant 0 : index
    %c0_25 = arith.constant 0 : index
    %33 = vector.load %arg12[%c0_23, %c0_24, %c0_25] : memref<4x8x8xf32, #tpu.memory_space<vmem>>, vector<1x8x8xf32>
    %34 = vector.shape_cast %33 : vector<1x8x8xf32> to vector<8x8xf32>
    %35 = arith.addf %32, %34 : vector<8x8xf32>
    %cst_26 = arith.constant -1.000000e+09 : f32
    %36 = vector.broadcast %cst_26 : f32 to vector<8x8xf32>
    %37 = arith.select %17, %35, %36 : vector<8x8xi1>, vector<8x8xf32>
    %cst_27 = arith.constant dense<0xFF800000> : vector<8xf32>
    %38 = vector.multi_reduction <maximumf>, %37, %cst_27 [1] : vector<8x8xf32> to vector<8xf32>
    %39 = vector.shape_cast %38 : vector<8xf32> to vector<8x1xf32>
    %40 = vector.broadcast %39 : vector<8x1xf32> to vector<8x8xf32>
    %41 = arith.subf %37, %40 : vector<8x8xf32>
    %42 = math.exp %41 : vector<8x8xf32>
    %cst_28 = arith.constant dense<0.000000e+00> : vector<8xf32>
    %43 = vector.multi_reduction <add>, %42, %cst_28 [1] : vector<8x8xf32> to vector<8xf32>
    %44 = vector.shape_cast %43 : vector<8xf32> to vector<8x1xf32>
    %45 = tpu.reciprocal %44 {approx = true} : vector<8x1xf32> -> vector<8x1xf32>
    %46 = vector.broadcast %45 : vector<8x1xf32> to vector<8x8xf32>
    %47 = arith.mulf %42, %46 : vector<8x8xf32>
    %c0_29 = arith.constant 0 : index
    %c0_30 = arith.constant 0 : index
    %c0_31 = arith.constant 0 : index
    %c0_32 = arith.constant 0 : index
    %48 = vector.load %arg14[%c0_29, %c0_30, %c0_31, %c0_32] : memref<1x4x8x8xf32, #tpu.memory_space<vmem>>, vector<1x1x8x8xf32>
    %49 = vector.shape_cast %48 : vector<1x1x8x8xf32> to vector<8x8xf32>
    %50 = vector.shape_cast %47 : vector<8x8xf32> to vector<1x1x8x8xf32>
    tpu.vector_store %arg14[%c0_29, %c0_30, %c0_31, %c0_32], %50 {strides = array<i32>} : memref<1x4x8x8xf32, #tpu.memory_space<vmem>>, vector<1x1x8x8xf32>,
    %51 = arith.truncf %47 : vector<8x8xf32> to vector<8x8xbf16>
    %52 = arith.truncf %29 : vector<8x8xf32> to vector<8x8xbf16>
    %cst_33 = arith.constant dense<0.000000e+00> : vector<8x8xf32>
    %53 = tpu.matmul %51, %52, %cst_33 {dimension_numbers = #tpu.dot_dimension_numbers<[1], [0], [0], [1], [0, 0, 1, 1], [], []>} : vector<8x8xbf16>, vector<8x8xbf16>, vector<8x8xf32> -> vector<8x8xf32>
    %54 = arith.truncf %53 : vector<8x8xf32> to vector<8x8xbf16>
    %c0_34 = arith.constant 0 : index
    %c0_35 = arith.constant 0 : index
    %c0_36 = arith.constant 0 : index
    %55 = vector.load %arg7[%c0_34, %c0_35, %c0_36] : memref<4x8x32xbf16, #tpu.memory_space<vmem>>, vector<1x8x32xbf16>
    %56 = vector.shape_cast %55 : vector<1x8x32xbf16> to vector<8x32xbf16>
    %cst_37 = arith.constant dense<0.000000e+00> : vector<8x32xf32>
    %57 = tpu.matmul %54, %56, %cst_37 {dimension_numbers = #tpu.dot_dimension_numbers<[1], [0], [0], [1], [0, 0, 1, 1], [], []>} : vector<8x8xbf16>, vector<8x32xbf16>, vector<8x32xf32> -> vector<8x32xf32>
    %58 = arith.addf %18, %57 : vector<8x32xf32>
    %c1 = arith.constant 1 : index
    %c0_38 = arith.constant 0 : index
    %c0_39 = arith.constant 0 : index
    %59 = vector.load %arg4[%c1, %c0_38, %c0_39] : memref<4x32x8xbf16, #tpu.memory_space<vmem>>, vector<1x32x8xbf16>
    %60 = vector.shape_cast %59 : vector<1x32x8xbf16> to vector<32x8xbf16>
    %cst_40 = arith.constant dense<0.000000e+00> : vector<8x8xf32>
    %61 = tpu.matmul %2, %60, %cst_40 {dimension_numbers = #tpu.dot_dimension_numbers<[1], [0], [0], [1], [0, 0, 1, 1], [], []>} : vector<8x32xbf16>, vector<32x8xbf16>, vector<8x8xf32> -> vector<8x8xf32>
    %cst_41 = arith.constant 0.353553385 : f32
    %62 = vector.broadcast %cst_41 : f32 to vector<8x8xf32>
    %63 = arith.mulf %61, %62 : vector<8x8xf32>
    %c1_42 = arith.constant 1 : index
    %c0_43 = arith.constant 0 : index
    %c0_44 = arith.constant 0 : index
    %64 = vector.load %arg5[%c1_42, %c0_43, %c0_44] : memref<4x32x8xbf16, #tpu.memory_space<vmem>>, vector<1x32x8xbf16>
    %65 = vector.shape_cast %64 : vector<1x32x8xbf16> to vector<32x8xbf16>
    %cst_45 = arith.constant dense<0.000000e+00> : vector<8x8xf32>
    %66 = tpu.matmul %5, %65, %cst_45 {dimension_numbers = #tpu.dot_dimension_numbers<[1], [0], [0], [1], [0, 0, 1, 1], [], []>} : vector<8x32xbf16>, vector<32x8xbf16>, vector<8x8xf32> -> vector<8x8xf32>
    %c1_46 = arith.constant 1 : index
    %c0_47 = arith.constant 0 : index
    %c0_48 = arith.constant 0 : index
    %67 = vector.load %arg6[%c1_46, %c0_47, %c0_48] : memref<4x32x8xbf16, #tpu.memory_space<vmem>>, vector<1x32x8xbf16>
    %68 = vector.shape_cast %67 : vector<1x32x8xbf16> to vector<32x8xbf16>
    %cst_49 = arith.constant dense<0.000000e+00> : vector<8x8xf32>
    %69 = tpu.matmul %5, %68, %cst_49 {dimension_numbers = #tpu.dot_dimension_numbers<[1], [0], [0], [1], [0, 0, 1, 1], [], []>} : vector<8x32xbf16>, vector<32x8xbf16>, vector<8x8xf32> -> vector<8x8xf32>
    %70 = arith.truncf %63 : vector<8x8xf32> to vector<8x8xbf16>
    %71 = arith.truncf %66 : vector<8x8xf32> to vector<8x8xbf16>
    %cst_50 = arith.constant dense<0.000000e+00> : vector<8x8xf32>
    %72 = tpu.matmul %70, %71, %cst_50 {dimension_numbers = #tpu.dot_dimension_numbers<[1], [1], [0], [0], [0, 0, 1, 0], [], []>} : vector<8x8xbf16>, vector<8x8xbf16>, vector<8x8xf32> -> vector<8x8xf32>
    %c1_51 = arith.constant 1 : index
    %c0_52 = arith.constant 0 : index
    %c0_53 = arith.constant 0 : index
    %73 = vector.load %arg12[%c1_51, %c0_52, %c0_53] : memref<4x8x8xf32, #tpu.memory_space<vmem>>, vector<1x8x8xf32>
    %74 = vector.shape_cast %73 : vector<1x8x8xf32> to vector<8x8xf32>
    %75 = arith.addf %72, %74 : vector<8x8xf32>
    %cst_54 = arith.constant -1.000000e+09 : f32
    %76 = vector.broadcast %cst_54 : f32 to vector<8x8xf32>
    %77 = arith.select %17, %75, %76 : vector<8x8xi1>, vector<8x8xf32>
    %cst_55 = arith.constant dense<0xFF800000> : vector<8xf32>
    %78 = vector.multi_reduction <maximumf>, %77, %cst_55 [1] : vector<8x8xf32> to vector<8xf32>
    %79 = vector.shape_cast %78 : vector<8xf32> to vector<8x1xf32>
    %80 = vector.broadcast %79 : vector<8x1xf32> to vector<8x8xf32>
    %81 = arith.subf %77, %80 : vector<8x8xf32>
    %82 = math.exp %81 : vector<8x8xf32>
    %cst_56 = arith.constant dense<0.000000e+00> : vector<8xf32>
    %83 = vector.multi_reduction <add>, %82, %cst_56 [1] : vector<8x8xf32> to vector<8xf32>
    %84 = vector.shape_cast %83 : vector<8xf32> to vector<8x1xf32>
    %85 = tpu.reciprocal %84 {approx = true} : vector<8x1xf32> -> vector<8x1xf32>
    %86 = vector.broadcast %85 : vector<8x1xf32> to vector<8x8xf32>
    %87 = arith.mulf %82, %86 : vector<8x8xf32>
    %c0_57 = arith.constant 0 : index
    %c1_58 = arith.constant 1 : index
    %c0_59 = arith.constant 0 : index
    %c0_60 = arith.constant 0 : index
    %88 = vector.load %arg14[%c0_57, %c1_58, %c0_59, %c0_60] : memref<1x4x8x8xf32, #tpu.memory_space<vmem>>, vector<1x1x8x8xf32>
    %89 = vector.shape_cast %88 : vector<1x1x8x8xf32> to vector<8x8xf32>
    %90 = vector.shape_cast %87 : vector<8x8xf32> to vector<1x1x8x8xf32>
    tpu.vector_store %arg14[%c0_57, %c1_58, %c0_59, %c0_60], %90 {strides = array<i32>} : memref<1x4x8x8xf32, #tpu.memory_space<vmem>>, vector<1x1x8x8xf32>,
    %91 = arith.truncf %87 : vector<8x8xf32> to vector<8x8xbf16>
    %92 = arith.truncf %69 : vector<8x8xf32> to vector<8x8xbf16>
    %cst_61 = arith.constant dense<0.000000e+00> : vector<8x8xf32>
    %93 = tpu.matmul %91, %92, %cst_61 {dimension_numbers = #tpu.dot_dimension_numbers<[1], [0], [0], [1], [0, 0, 1, 1], [], []>} : vector<8x8xbf16>, vector<8x8xbf16>, vector<8x8xf32> -> vector<8x8xf32>
    %94 = arith.truncf %93 : vector<8x8xf32> to vector<8x8xbf16>
    %c1_62 = arith.constant 1 : index
    %c0_63 = arith.constant 0 : index
    %c0_64 = arith.constant 0 : index
    %95 = vector.load %arg7[%c1_62, %c0_63, %c0_64] : memref<4x8x32xbf16, #tpu.memory_space<vmem>>, vector<1x8x32xbf16>
    %96 = vector.shape_cast %95 : vector<1x8x32xbf16> to vector<8x32xbf16>
    %cst_65 = arith.constant dense<0.000000e+00> : vector<8x32xf32>
    %97 = tpu.matmul %94, %96, %cst_65 {dimension_numbers = #tpu.dot_dimension_numbers<[1], [0], [0], [1], [0, 0, 1, 1], [], []>} : vector<8x8xbf16>, vector<8x32xbf16>, vector<8x32xf32> -> vector<8x32xf32>
    %98 = arith.addf %58, %97 : vector<8x32xf32>
    %c2 = arith.constant 2 : index
    %c0_66 = arith.constant 0 : index
    %c0_67 = arith.constant 0 : index
    %99 = vector.load %arg4[%c2, %c0_66, %c0_67] : memref<4x32x8xbf16, #tpu.memory_space<vmem>>, vector<1x32x8xbf16>
    %100 = vector.shape_cast %99 : vector<1x32x8xbf16> to vector<32x8xbf16>
    %cst_68 = arith.constant dense<0.000000e+00> : vector<8x8xf32>
    %101 = tpu.matmul %2, %100, %cst_68 {dimension_numbers = #tpu.dot_dimension_numbers<[1], [0], [0], [1], [0, 0, 1, 1], [], []>} : vector<8x32xbf16>, vector<32x8xbf16>, vector<8x8xf32> -> vector<8x8xf32>
    %cst_69 = arith.constant 0.353553385 : f32
    %102 = vector.broadcast %cst_69 : f32 to vector<8x8xf32>
    %103 = arith.mulf %101, %102 : vector<8x8xf32>
    %c2_70 = arith.constant 2 : index
    %c0_71 = arith.constant 0 : index
    %c0_72 = arith.constant 0 : index
    %104 = vector.load %arg5[%c2_70, %c0_71, %c0_72] : memref<4x32x8xbf16, #tpu.memory_space<vmem>>, vector<1x32x8xbf16>
    %105 = vector.shape_cast %104 : vector<1x32x8xbf16> to vector<32x8xbf16>
    %cst_73 = arith.constant dense<0.000000e+00> : vector<8x8xf32>
    %106 = tpu.matmul %5, %105, %cst_73 {dimension_numbers = #tpu.dot_dimension_numbers<[1], [0], [0], [1], [0, 0, 1, 1], [], []>} : vector<8x32xbf16>, vector<32x8xbf16>, vector<8x8xf32> -> vector<8x8xf32>
    %c2_74 = arith.constant 2 : index
    %c0_75 = arith.constant 0 : index
    %c0_76 = arith.constant 0 : index
    %107 = vector.load %arg6[%c2_74, %c0_75, %c0_76] : memref<4x32x8xbf16, #tpu.memory_space<vmem>>, vector<1x32x8xbf16>
    %108 = vector.shape_cast %107 : vector<1x32x8xbf16> to vector<32x8xbf16>
    %cst_77 = arith.constant dense<0.000000e+00> : vector<8x8xf32>
    %109 = tpu.matmul %5, %108, %cst_77 {dimension_numbers = #tpu.dot_dimension_numbers<[1], [0], [0], [1], [0, 0, 1, 1], [], []>} : vector<8x32xbf16>, vector<32x8xbf16>, vector<8x8xf32> -> vector<8x8xf32>
    %110 = arith.truncf %103 : vector<8x8xf32> to vector<8x8xbf16>
    %111 = arith.truncf %106 : vector<8x8xf32> to vector<8x8xbf16>
    %cst_78 = arith.constant dense<0.000000e+00> : vector<8x8xf32>
    %112 = tpu.matmul %110, %111, %cst_78 {dimension_numbers = #tpu.dot_dimension_numbers<[1], [1], [0], [0], [0, 0, 1, 0], [], []>} : vector<8x8xbf16>, vector<8x8xbf16>, vector<8x8xf32> -> vector<8x8xf32>
    %c2_79 = arith.constant 2 : index
    %c0_80 = arith.constant 0 : index
    %c0_81 = arith.constant 0 : index
    %113 = vector.load %arg12[%c2_79, %c0_80, %c0_81] : memref<4x8x8xf32, #tpu.memory_space<vmem>>, vector<1x8x8xf32>
    %114 = vector.shape_cast %113 : vector<1x8x8xf32> to vector<8x8xf32>
    %115 = arith.addf %112, %114 : vector<8x8xf32>
    %cst_82 = arith.constant -1.000000e+09 : f32
    %116 = vector.broadcast %cst_82 : f32 to vector<8x8xf32>
    %117 = arith.select %17, %115, %116 : vector<8x8xi1>, vector<8x8xf32>
    %cst_83 = arith.constant dense<0xFF800000> : vector<8xf32>
    %118 = vector.multi_reduction <maximumf>, %117, %cst_83 [1] : vector<8x8xf32> to vector<8xf32>
    %119 = vector.shape_cast %118 : vector<8xf32> to vector<8x1xf32>
    %120 = vector.broadcast %119 : vector<8x1xf32> to vector<8x8xf32>
    %121 = arith.subf %117, %120 : vector<8x8xf32>
    %122 = math.exp %121 : vector<8x8xf32>
    %cst_84 = arith.constant dense<0.000000e+00> : vector<8xf32>
    %123 = vector.multi_reduction <add>, %122, %cst_84 [1] : vector<8x8xf32> to vector<8xf32>
    %124 = vector.shape_cast %123 : vector<8xf32> to vector<8x1xf32>
    %125 = tpu.reciprocal %124 {approx = true} : vector<8x1xf32> -> vector<8x1xf32>
    %126 = vector.broadcast %125 : vector<8x1xf32> to vector<8x8xf32>
    %127 = arith.mulf %122, %126 : vector<8x8xf32>
    %c0_85 = arith.constant 0 : index
    %c2_86 = arith.constant 2 : index
    %c0_87 = arith.constant 0 : index
    %c0_88 = arith.constant 0 : index
    %128 = vector.load %arg14[%c0_85, %c2_86, %c0_87, %c0_88] : memref<1x4x8x8xf32, #tpu.memory_space<vmem>>, vector<1x1x8x8xf32>
    %129 = vector.shape_cast %128 : vector<1x1x8x8xf32> to vector<8x8xf32>
    %130 = vector.shape_cast %127 : vector<8x8xf32> to vector<1x1x8x8xf32>
    tpu.vector_store %arg14[%c0_85, %c2_86, %c0_87, %c0_88], %130 {strides = array<i32>} : memref<1x4x8x8xf32, #tpu.memory_space<vmem>>, vector<1x1x8x8xf32>,
    %131 = arith.truncf %127 : vector<8x8xf32> to vector<8x8xbf16>
    %132 = arith.truncf %109 : vector<8x8xf32> to vector<8x8xbf16>
    %cst_89 = arith.constant dense<0.000000e+00> : vector<8x8xf32>
    %133 = tpu.matmul %131, %132, %cst_89 {dimension_numbers = #tpu.dot_dimension_numbers<[1], [0], [0], [1], [0, 0, 1, 1], [], []>} : vector<8x8xbf16>, vector<8x8xbf16>, vector<8x8xf32> -> vector<8x8xf32>
    %134 = arith.truncf %133 : vector<8x8xf32> to vector<8x8xbf16>
    %c2_90 = arith.constant 2 : index
    %c0_91 = arith.constant 0 : index
    %c0_92 = arith.constant 0 : index
    %135 = vector.load %arg7[%c2_90, %c0_91, %c0_92] : memref<4x8x32xbf16, #tpu.memory_space<vmem>>, vector<1x8x32xbf16>
    %136 = vector.shape_cast %135 : vector<1x8x32xbf16> to vector<8x32xbf16>
    %cst_93 = arith.constant dense<0.000000e+00> : vector<8x32xf32>
    %137 = tpu.matmul %134, %136, %cst_93 {dimension_numbers = #tpu.dot_dimension_numbers<[1], [0], [0], [1], [0, 0, 1, 1], [], []>} : vector<8x8xbf16>, vector<8x32xbf16>, vector<8x32xf32> -> vector<8x32xf32>
    %138 = arith.addf %98, %137 : vector<8x32xf32>
    %c3 = arith.constant 3 : index
    %c0_94 = arith.constant 0 : index
    %c0_95 = arith.constant 0 : index
    %139 = vector.load %arg4[%c3, %c0_94, %c0_95] : memref<4x32x8xbf16, #tpu.memory_space<vmem>>, vector<1x32x8xbf16>
    %140 = vector.shape_cast %139 : vector<1x32x8xbf16> to vector<32x8xbf16>
    %cst_96 = arith.constant dense<0.000000e+00> : vector<8x8xf32>
    %141 = tpu.matmul %2, %140, %cst_96 {dimension_numbers = #tpu.dot_dimension_numbers<[1], [0], [0], [1], [0, 0, 1, 1], [], []>} : vector<8x32xbf16>, vector<32x8xbf16>, vector<8x8xf32> -> vector<8x8xf32>
    %cst_97 = arith.constant 0.353553385 : f32
    %142 = vector.broadcast %cst_97 : f32 to vector<8x8xf32>
    %143 = arith.mulf %141, %142 : vector<8x8xf32>
    %c3_98 = arith.constant 3 : index
    %c0_99 = arith.constant 0 : index
    %c0_100 = arith.constant 0 : index
    %144 = vector.load %arg5[%c3_98, %c0_99, %c0_100] : memref<4x32x8xbf16, #tpu.memory_space<vmem>>, vector<1x32x8xbf16>
    %145 = vector.shape_cast %144 : vector<1x32x8xbf16> to vector<32x8xbf16>
    %cst_101 = arith.constant dense<0.000000e+00> : vector<8x8xf32>
    %146 = tpu.matmul %5, %145, %cst_101 {dimension_numbers = #tpu.dot_dimension_numbers<[1], [0], [0], [1], [0, 0, 1, 1], [], []>} : vector<8x32xbf16>, vector<32x8xbf16>, vector<8x8xf32> -> vector<8x8xf32>
    %c3_102 = arith.constant 3 : index
    %c0_103 = arith.constant 0 : index
    %c0_104 = arith.constant 0 : index
    %147 = vector.load %arg6[%c3_102, %c0_103, %c0_104] : memref<4x32x8xbf16, #tpu.memory_space<vmem>>, vector<1x32x8xbf16>
    %148 = vector.shape_cast %147 : vector<1x32x8xbf16> to vector<32x8xbf16>
    %cst_105 = arith.constant dense<0.000000e+00> : vector<8x8xf32>
    %149 = tpu.matmul %5, %148, %cst_105 {dimension_numbers = #tpu.dot_dimension_numbers<[1], [0], [0], [1], [0, 0, 1, 1], [], []>} : vector<8x32xbf16>, vector<32x8xbf16>, vector<8x8xf32> -> vector<8x8xf32>
    %150 = arith.truncf %143 : vector<8x8xf32> to vector<8x8xbf16>
    %151 = arith.truncf %146 : vector<8x8xf32> to vector<8x8xbf16>
    %cst_106 = arith.constant dense<0.000000e+00> : vector<8x8xf32>
    %152 = tpu.matmul %150, %151, %cst_106 {dimension_numbers = #tpu.dot_dimension_numbers<[1], [1], [0], [0], [0, 0, 1, 0], [], []>} : vector<8x8xbf16>, vector<8x8xbf16>, vector<8x8xf32> -> vector<8x8xf32>
    %c3_107 = arith.constant 3 : index
    %c0_108 = arith.constant 0 : index
    %c0_109 = arith.constant 0 : index
    %153 = vector.load %arg12[%c3_107, %c0_108, %c0_109] : memref<4x8x8xf32, #tpu.memory_space<vmem>>, vector<1x8x8xf32>
    %154 = vector.shape_cast %153 : vector<1x8x8xf32> to vector<8x8xf32>
    %155 = arith.addf %152, %154 : vector<8x8xf32>
    %cst_110 = arith.constant -1.000000e+09 : f32
    %156 = vector.broadcast %cst_110 : f32 to vector<8x8xf32>
    %157 = arith.select %17, %155, %156 : vector<8x8xi1>, vector<8x8xf32>
    %cst_111 = arith.constant dense<0xFF800000> : vector<8xf32>
    %158 = vector.multi_reduction <maximumf>, %157, %cst_111 [1] : vector<8x8xf32> to vector<8xf32>
    %159 = vector.shape_cast %158 : vector<8xf32> to vector<8x1xf32>
    %160 = vector.broadcast %159 : vector<8x1xf32> to vector<8x8xf32>
    %161 = arith.subf %157, %160 : vector<8x8xf32>
    %162 = math.exp %161 : vector<8x8xf32>
    %cst_112 = arith.constant dense<0.000000e+00> : vector<8xf32>
    %163 = vector.multi_reduction <add>, %162, %cst_112 [1] : vector<8x8xf32> to vector<8xf32>
    %164 = vector.shape_cast %163 : vector<8xf32> to vector<8x1xf32>
    %165 = tpu.reciprocal %164 {approx = true} : vector<8x1xf32> -> vector<8x1xf32>
    %166 = vector.broadcast %165 : vector<8x1xf32> to vector<8x8xf32>
    %167 = arith.mulf %162, %166 : vector<8x8xf32>
    %c0_113 = arith.constant 0 : index
    %c3_114 = arith.constant 3 : index
    %c0_115 = arith.constant 0 : index
    %c0_116 = arith.constant 0 : index
    %168 = vector.load %arg14[%c0_113, %c3_114, %c0_115, %c0_116] : memref<1x4x8x8xf32, #tpu.memory_space<vmem>>, vector<1x1x8x8xf32>
    %169 = vector.shape_cast %168 : vector<1x1x8x8xf32> to vector<8x8xf32>
    %170 = vector.shape_cast %167 : vector<8x8xf32> to vector<1x1x8x8xf32>
    tpu.vector_store %arg14[%c0_113, %c3_114, %c0_115, %c0_116], %170 {strides = array<i32>} : memref<1x4x8x8xf32, #tpu.memory_space<vmem>>, vector<1x1x8x8xf32>,
    %171 = arith.truncf %167 : vector<8x8xf32> to vector<8x8xbf16>
    %172 = arith.truncf %149 : vector<8x8xf32> to vector<8x8xbf16>
    %cst_117 = arith.constant dense<0.000000e+00> : vector<8x8xf32>
    %173 = tpu.matmul %171, %172, %cst_117 {dimension_numbers = #tpu.dot_dimension_numbers<[1], [0], [0], [1], [0, 0, 1, 1], [], []>} : vector<8x8xbf16>, vector<8x8xbf16>, vector<8x8xf32> -> vector<8x8xf32>
    %174 = arith.truncf %173 : vector<8x8xf32> to vector<8x8xbf16>
    %c3_118 = arith.constant 3 : index
    %c0_119 = arith.constant 0 : index
    %c0_120 = arith.constant 0 : index
    %175 = vector.load %arg7[%c3_118, %c0_119, %c0_120] : memref<4x8x32xbf16, #tpu.memory_space<vmem>>, vector<1x8x32xbf16>
    %176 = vector.shape_cast %175 : vector<1x8x32xbf16> to vector<8x32xbf16>
    %cst_121 = arith.constant dense<0.000000e+00> : vector<8x32xf32>
    %177 = tpu.matmul %174, %176, %cst_121 {dimension_numbers = #tpu.dot_dimension_numbers<[1], [0], [0], [1], [0, 0, 1, 1], [], []>} : vector<8x8xbf16>, vector<8x32xbf16>, vector<8x32xf32> -> vector<8x32xf32>
    %178 = arith.addf %138, %177 : vector<8x32xf32>
    %179 = arith.addf %178, %1 : vector<8x32xf32>
    %cst_122 = arith.constant dense<0.000000e+00> : vector<8xf32>
    %180 = vector.multi_reduction <add>, %179, %cst_122 [1] : vector<8x32xf32> to vector<8xf32>
    %181 = vector.shape_cast %180 : vector<8xf32> to vector<8x1xf32>
    %cst_123 = arith.constant 3.200000e+01 : f32
    %182 = vector.broadcast %cst_123 : f32 to vector<8x1xf32>
    %183 = arith.divf %181, %182 : vector<8x1xf32>
    %184 = vector.broadcast %183 : vector<8x1xf32> to vector<8x32xf32>
    %185 = arith.subf %179, %184 : vector<8x32xf32>
    %186 = arith.mulf %185, %185 : vector<8x32xf32>
    %cst_124 = arith.constant dense<0.000000e+00> : vector<8xf32>
    %187 = vector.multi_reduction <add>, %186, %cst_124 [1] : vector<8x32xf32> to vector<8xf32>
    %188 = vector.shape_cast %187 : vector<8xf32> to vector<8x1xf32>
    %cst_125 = arith.constant 3.200000e+01 : f32
    %189 = vector.broadcast %cst_125 : f32 to vector<8x1xf32>
    %190 = arith.divf %188, %189 : vector<8x1xf32>
    %191 = vector.broadcast %183 : vector<8x1xf32> to vector<8x32xf32>
    %192 = arith.subf %179, %191 : vector<8x32xf32>
    %cst_126 = arith.constant 9.99999997E-7 : f32
    %193 = vector.broadcast %cst_126 : f32 to vector<8x1xf32>
    %194 = arith.addf %190, %193 : vector<8x1xf32>
    %195 = math.rsqrt %194 : vector<8x1xf32>
    %196 = vector.broadcast %195 : vector<8x1xf32> to vector<8x32xf32>
    %197 = arith.mulf %192, %196 : vector<8x32xf32>
    %c0_127 = arith.constant 0 : index
    %c0_128 = arith.constant 0 : index
    %198 = vector.load %arg8[%c0_127, %c0_128] : memref<1x32xf32, #tpu.memory_space<vmem>>, vector<1x32xf32>
    %199 = vector.broadcast %198 : vector<1x32xf32> to vector<8x32xf32>
    %200 = arith.mulf %197, %199 : vector<8x32xf32>
    %c0_129 = arith.constant 0 : index
    %c0_130 = arith.constant 0 : index
    %201 = vector.load %arg9[%c0_129, %c0_130] : memref<1x32xf32, #tpu.memory_space<vmem>>, vector<1x32xf32>
    %202 = vector.broadcast %201 : vector<1x32xf32> to vector<8x32xf32>
    %203 = arith.addf %200, %202 : vector<8x32xf32>
    %c0_131 = arith.constant 0 : index
    %c0_132 = arith.constant 0 : index
    %c0_133 = arith.constant 0 : index
    %204 = vector.load %arg11[%c0_131, %c0_132, %c0_133] : memref<1x8x1xf32, #tpu.memory_space<vmem>>, vector<1x8x1xf32>
    %205 = vector.shape_cast %204 : vector<1x8x1xf32> to vector<8x1xf32>
    %cst_134 = arith.constant 0.000000e+00 : f32
    %206 = vector.broadcast %cst_134 : f32 to vector<8x1xf32>
    %207 = arith.cmpf one, %205, %206 : vector<8x1xf32>
    %cst_135 = arith.constant 0.000000e+00 : f32
    %208 = vector.shape_cast %207 : vector<8x1xi1> to vector<8x1xi1>
    %209 = vector.broadcast %208 : vector<8x1xi1> to vector<8x32xi1>
    %210 = vector.broadcast %cst_135 : f32 to vector<8x32xf32>
    %211 = arith.select %209, %210, %203 : vector<8x32xi1>, vector<8x32xf32>
    %c0_136 = arith.constant 0 : index
    %c0_137 = arith.constant 0 : index
    %c0_138 = arith.constant 0 : index
    %212 = vector.load %arg13[%c0_136, %c0_137, %c0_138] : memref<1x8x32xf32, #tpu.memory_space<vmem>>, vector<1x8x32xf32>
    %213 = vector.shape_cast %212 : vector<1x8x32xf32> to vector<8x32xf32>
    %214 = vector.shape_cast %211 : vector<8x32xf32> to vector<1x8x32xf32>
    tpu.vector_store %arg13[%c0_136, %c0_137, %c0_138], %214 {strides = array<i32>} : memref<1x8x32xf32, #tpu.memory_space<vmem>>, vector<1x8x32xf32>,
    return
  }
  func.func @transform_0(%arg0: i32, %arg1: i32) -> (i32, i32, i32) {
    %c0_i32 = arith.constant 0 : i32
    %c0_i32_0 = arith.constant 0 : i32
    return %arg0, %arg1, %c0_i32 : i32, i32, i32
  }
  func.func @transform_1(%arg0: i32, %arg1: i32) -> (i32, i32, i32) {
    %c0_i32 = arith.constant 0 : i32
    %c0_i32_0 = arith.constant 0 : i32
    %c0_i32_1 = arith.constant 0 : i32
    return %arg0, %c0_i32, %c0_i32_0 : i32, i32, i32
  }
  func.func @transform_2(%arg0: i32, %arg1: i32) -> (i32, i32, i32) {
    %c0_i32 = arith.constant 0 : i32
    %c0_i32_0 = arith.constant 0 : i32
    %c0_i32_1 = arith.constant 0 : i32
    %c0_i32_2 = arith.constant 0 : i32
    return %c0_i32, %c0_i32_0, %c0_i32_1 : i32, i32, i32
  }
  func.func @transform_3(%arg0: i32, %arg1: i32) -> (i32, i32, i32) {
    %c0_i32 = arith.constant 0 : i32
    %c0_i32_0 = arith.constant 0 : i32
    %c0_i32_1 = arith.constant 0 : i32
    %c0_i32_2 = arith.constant 0 : i32
    return %c0_i32, %c0_i32_0, %c0_i32_1 : i32, i32, i32
  }
  func.func @transform_4(%arg0: i32, %arg1: i32) -> (i32, i32, i32) {
    %c0_i32 = arith.constant 0 : i32
    %c0_i32_0 = arith.constant 0 : i32
    %c0_i32_1 = arith.constant 0 : i32
    %c0_i32_2 = arith.constant 0 : i32
    return %c0_i32, %c0_i32_0, %c0_i32_1 : i32, i32, i32
  }
  func.func @transform_5(%arg0: i32, %arg1: i32) -> (i32, i32, i32) {
    %c0_i32 = arith.constant 0 : i32
    %c0_i32_0 = arith.constant 0 : i32
    %c0_i32_1 = arith.constant 0 : i32
    %c0_i32_2 = arith.constant 0 : i32
    return %c0_i32, %c0_i32_0, %c0_i32_1 : i32, i32, i32
  }
  func.func @transform_6(%arg0: i32, %arg1: i32) -> (i32, i32) {
    %c0_i32 = arith.constant 0 : i32
    %c0_i32_0 = arith.constant 0 : i32
    %c0_i32_1 = arith.constant 0 : i32
    return %c0_i32, %c0_i32_0 : i32, i32
  }
  func.func @transform_7(%arg0: i32, %arg1: i32) -> (i32, i32) {
    %c0_i32 = arith.constant 0 : i32
    %c0_i32_0 = arith.constant 0 : i32
    %c0_i32_1 = arith.constant 0 : i32
    return %c0_i32, %c0_i32_0 : i32, i32
  }
  func.func @transform_8(%arg0: i32, %arg1: i32) -> (i32, i32, i32) {
    %c0_i32 = arith.constant 0 : i32
    %c0_i32_0 = arith.constant 0 : i32
    %c0_i32_1 = arith.constant 0 : i32
    return %arg0, %c0_i32, %c0_i32_0 : i32, i32, i32
  }
  func.func @transform_9(%arg0: i32, %arg1: i32) -> (i32, i32, i32) {
    %c0_i32 = arith.constant 0 : i32
    %c0_i32_0 = arith.constant 0 : i32
    return %arg0, %arg1, %c0_i32 : i32, i32, i32
  }
  func.func @transform_10(%arg0: i32, %arg1: i32) -> (i32, i32, i32) {
    %c0_i32 = arith.constant 0 : i32
    %c0_i32_0 = arith.constant 0 : i32
    %c0_i32_1 = arith.constant 0 : i32
    return %c0_i32, %arg1, %c0_i32_0 : i32, i32, i32
  }
  func.func @transform_11(%arg0: i32, %arg1: i32) -> (i32, i32, i32) {
    %c0_i32 = arith.constant 0 : i32
    %c0_i32_0 = arith.constant 0 : i32
    return %arg0, %arg1, %c0_i32 : i32, i32, i32
  }
  func.func @transform_12(%arg0: i32, %arg1: i32) -> (i32, i32, i32, i32) {
    %c0_i32 = arith.constant 0 : i32
    %c0_i32_0 = arith.constant 0 : i32
    %c0_i32_1 = arith.constant 0 : i32
    return %arg0, %c0_i32, %arg1, %c0_i32_0 : i32, i32, i32, i32
  }
}

</mosaic_0001>

<llo_original>
// kernel: tpu_custom_call.1
$region0: #{tpu_custom_call.1}
  #allocation0 [shape = 'u32[]', space=smem, size = 0x4, offset = 0x4, fixed_abs, tag = 'smem constant byte address 0x4 - core index']
  #allocation1 [shape = 'u32[144,128]{1,0:T(1,128)}', space=vmem, size = 0x12000, scoped, tag = 'internal scratch']
  %s0 = inlined_call_operand.vmem [shape: f32[2,8,32], index: 0, kind: input, shape index: {}]
  %s1 = inlined_call_operand.vmem [shape: f32[2,8,32], index: 1, kind: input, shape index: {}]
  %s2 = inlined_call_operand.vmem [shape: bf16[4,32,8], index: 2, kind: input, shape index: {}]
  %s3 = inlined_call_operand.vmem [shape: bf16[4,32,8], index: 3, kind: input, shape index: {}]
  %s4 = inlined_call_operand.vmem [shape: bf16[4,32,8], index: 4, kind: input, shape index: {}]
  %s5 = inlined_call_operand.vmem [shape: bf16[4,8,32], index: 5, kind: input, shape index: {}]
  %s6 = inlined_call_operand.vmem [shape: f32[1,32], index: 6, kind: input, shape index: {}]
  %s7 = inlined_call_operand.vmem [shape: f32[1,32], index: 7, kind: input, shape index: {}]
  %s8 = inlined_call_operand.vmem [shape: f32[2,1,8], index: 8, kind: input, shape index: {}]
  %s9 = inlined_call_operand.vmem [shape: f32[2,8,1], index: 9, kind: input, shape index: {}]
  %s10 = inlined_call_operand.vmem [shape: f32[4,8,8], index: 10, kind: input, shape index: {}]
  %s11 = inlined_call_operand.hbm [shape: f32[2,8,32], index: 11, kind: output, shape index: {0}]
  %s12 = inlined_call_operand.hbm [shape: f32[2,4,8,8], index: 12, kind: output, shape index: {1}]
  %13 = xla_tuple %s11, %s12
  %s14 = sld [smem:[#allocation0]]
  $region85: #{tpu_custom_call.1} parent=0
    _
  %s16 = ssub.s32 1, %s14
  %s17 = scalar_select 0, %s16, %s14
  $region1: #{tpu_custom_call.1} parent=0
    #allocation2 [shape = 'u8[8192]{0}', space=vmem, size = 0x2000, scoped, tag = 'output window, operand 0']
    #allocation3 [shape = 's32[2]{0}', space=sflag, size = 0x8, scoped, tag = 'scoped memory for tpu_custom_call.1']
    #allocation4 [shape = 'u8[32768]{0}', space=vmem, size = 0x8000, scoped, tag = 'output window, operand 1']
    #allocation5 [shape = 's32[2]{0}', space=sflag, size = 0x8, scoped, tag = 'scoped memory for tpu_custom_call.1']
    %18 = vsyncpa [#allocation3], 0
    %s19 = scalar_lea.sflag [#allocation3], 1
    %20 = vsyncpa %s19, 0
    %21 = vsyncpa [#allocation5], 0
    %s22 = scalar_lea.sflag [#allocation5], 1
    %23 = vsyncpa %s22, 0
    loop: start=0, step=1, limit=4
    $region2: #{tpu_custom_call.1} parent=1 // loop_pre_header
      _
    $region3: #{tpu_custom_call.1} parent=1 // loop_header
      %s25 = sphi 0, %s29
      %p26 = scmp.ge.s32.totalorder %s25, 4
      %s32 = sphi 0, %s44
      %s33 = sphi 0, %s40
      %s34 = sphi 0, %s32
      %s35 = sphi 0, %s33
      %s36 = sphi 0, %s34
      %s37 = sphi 0, %s35
      %s49 = sphi 0, %s51
      %s52 = sphi 0, %s49
      %s53 = sphi 0, %s52
      %s69 = sphi 0, %s53
      %s75 = sphi 0, %s77
      %s78 = sphi 0, %s75
      %s79 = sphi 0, %s78
      %s95 = sphi 0, %s79
      %s99 = sphi 0, %s99
      %s101 = sphi 0, %s99
      %s102 = sphi 0, %s101
      %s116 = sphi 0, %s102
      %s120 = sphi 0, %s120
      %s122 = sphi 0, %s120
      %s123 = sphi 0, %s122
      %s137 = sphi 0, %s123
      %s141 = sphi 0, %s141
      %s143 = sphi 0, %s141
      %s144 = sphi 0, %s143
      %s158 = sphi 0, %s144
      %s162 = sphi 0, %s162
      %s164 = sphi 0, %s162
      %s165 = sphi 0, %s164
      %s179 = sphi 0, %s165
      %s183 = sphi 0, %s183
      %s185 = sphi 0, %s183
      %s186 = sphi 0, %s185
      %s200 = sphi 0, %s186
      %s204 = sphi 0, %s204
      %s206 = sphi 0, %s204
      %s207 = sphi 0, %s206
      %s221 = sphi 0, %s207
      %s227 = sphi 0, %s229
      %s230 = sphi 0, %s227
      %s231 = sphi 0, %s230
      %s247 = sphi 0, %s231
      %s255 = sphi 0, %s257
      %s258 = sphi 0, %s255
      %s259 = sphi 0, %s258
      %s275 = sphi 0, %s259
      %s281 = sphi 0, %s283
      %s284 = sphi 0, %s281
      %s285 = sphi 0, %s284
      %s301 = sphi 0, %s285
      %s309 = sphi 0, %s311
      %s312 = sphi 0, %s309
      %s313 = sphi 0, %s312
      %s329 = sphi 0, %s313
      %s337 = sphi 0, %s339
      %s340 = sphi 0, %s337
      %s341 = sphi 0, %s340
      %s357 = sphi 0, %s341
    $region4: #{tpu_custom_call.1} parent=1 // loop_header_branch
      %28 = sbr.rel (%p26) target = $region8
    $region5: #{tpu_custom_call.1} parent=1 // loop_body
      %s30 = ssub.s32 %s25, 1
      %s31 = ssub.s32 %s25, 2
      %s38 = sadd.s32 1, %s33
      %p39 = scmp.ge.s32.totalorder %s38, 1
      %s40 = scalar_select %p39, 0, %s38
      %s41 = sadd.s32 1, %s32
      %s42 = scalar_select %p39, %s41, %s32
      %p43 = scmp.ge.s32.totalorder %s42, 2
      %s44 = scalar_select %p43, 0, %s42
      %s45 = ssub.s32 %s32, %s44
      %s46 = ssub.s32 %s33, %s40
      %s47 = sor.u32 %s45, %s46
      %p48 = scmp.eq.s32.totalorder %s47, 0
      %s50 = sadd.s32 %s49, 1
      %s51 = scalar_select %p48, %s49, %s50
      %p54 = pneg %p48
      %p55 = scmp.eq.s32.totalorder %s25, 1
      %p56 = por %p54, %p55
      %p57 = scmp.ne.s32.totalorder %s49, %s52
      %p58 = scmp.eq.s32.totalorder %s25, 0
      %p59 = por %p57, %p58
      %p60 = scmp.ne.s32.totalorder %s49, %s52
      %p61 = scmp.eq.s32.totalorder %s30, 1
      %p62 = por %p60, %p61
      %p63 = scmp.ne.s32.totalorder %s52, %s53
      %p64 = scmp.eq.s32.totalorder %s30, 0
      %p65 = por %p63, %p64
      %p66 = scmp.ne.s32.totalorder %s52, %s53
      %p67 = scmp.eq.s32.totalorder %s31, 1
      %p68 = por %p66, %p67
      %p70 = scmp.ne.s32.totalorder %s53, %s69
      %p71 = scmp.eq.s32.totalorder %s31, 0
      %p72 = por %p70, %p71
      %s73 = ssub.s32 %s32, %s44
      %p74 = scmp.eq.s32.totalorder %s73, 0
      %s76 = sadd.s32 %s75, 1
      %s77 = scalar_select %p74, %s75, %s76
      %p80 = pneg %p74
      %p81 = scmp.eq.s32.totalorder %s25, 1
      %p82 = por %p80, %p81
      %p83 = scmp.ne.s32.totalorder %s75, %s78
      %p84 = scmp.eq.s32.totalorder %s25, 0
      %p85 = por %p83, %p84
      %p86 = scmp.ne.s32.totalorder %s75, %s78
      %p87 = scmp.eq.s32.totalorder %s30, 1
      %p88 = por %p86, %p87
      %p89 = scmp.ne.s32.totalorder %s78, %s79
      %p90 = scmp.eq.s32.totalorder %s30, 0
      %p91 = por %p89, %p90
      %p92 = scmp.ne.s32.totalorder %s78, %s79
      %p93 = scmp.eq.s32.totalorder %s31, 1
      %p94 = por %p92, %p93
      %p96 = scmp.ne.s32.totalorder %s79, %s95
      %p97 = scmp.eq.s32.totalorder %s31, 0
      %p98 = por %p96, %p97
      %s100 = sadd.s32 %s99, 1
      %p103 = scmp.eq.s32.totalorder %s25, 1
      %p104 = scmp.ne.s32.totalorder %s99, %s101
      %p105 = scmp.eq.s32.totalorder %s25, 0
      %p106 = por %p104, %p105
      %p107 = scmp.ne.s32.totalorder %s99, %s101
      %p108 = scmp.eq.s32.totalorder %s30, 1
      %p109 = por %p107, %p108
      %p110 = scmp.ne.s32.totalorder %s101, %s102
      %p111 = scmp.eq.s32.totalorder %s30, 0
      %p112 = por %p110, %p111
      %p113 = scmp.ne.s32.totalorder %s101, %s102
      %p114 = scmp.eq.s32.totalorder %s31, 1
      %p115 = por %p113, %p114
      %p117 = scmp.ne.s32.totalorder %s102, %s116
      %p118 = scmp.eq.s32.totalorder %s31, 0
      %p119 = por %p117, %p118
      %s121 = sadd.s32 %s120, 1
      %p124 = scmp.eq.s32.totalorder %s25, 1
      %p125 = scmp.ne.s32.totalorder %s120, %s122
      %p126 = scmp.eq.s32.totalorder %s25, 0
      %p127 = por %p125, %p126
      %p128 = scmp.ne.s32.totalorder %s120, %s122
      %p129 = scmp.eq.s32.totalorder %s30, 1
      %p130 = por %p128, %p129
      %p131 = scmp.ne.s32.totalorder %s122, %s123
      %p132 = scmp.eq.s32.totalorder %s30, 0
      %p133 = por %p131, %p132
      %p134 = scmp.ne.s32.totalorder %s122, %s123
      %p135 = scmp.eq.s32.totalorder %s31, 1
      %p136 = por %p134, %p135
      %p138 = scmp.ne.s32.totalorder %s123, %s137
      %p139 = scmp.eq.s32.totalorder %s31, 0
      %p140 = por %p138, %p139
      %s142 = sadd.s32 %s141, 1
      %p145 = scmp.eq.s32.totalorder %s25, 1
      %p146 = scmp.ne.s32.totalorder %s141, %s143
      %p147 = scmp.eq.s32.totalorder %s25, 0
      %p148 = por %p146, %p147
      %p149 = scmp.ne.s32.totalorder %s141, %s143
      %p150 = scmp.eq.s32.totalorder %s30, 1
      %p151 = por %p149, %p150
      %p152 = scmp.ne.s32.totalorder %s143, %s144
      %p153 = scmp.eq.s32.totalorder %s30, 0
      %p154 = por %p152, %p153
      %p155 = scmp.ne.s32.totalorder %s143, %s144
      %p156 = scmp.eq.s32.totalorder %s31, 1
      %p157 = por %p155, %p156
      %p159 = scmp.ne.s32.totalorder %s144, %s158
      %p160 = scmp.eq.s32.totalorder %s31, 0
      %p161 = por %p159, %p160
      %s163 = sadd.s32 %s162, 1
      %p166 = scmp.eq.s32.totalorder %s25, 1
      %p167 = scmp.ne.s32.totalorder %s162, %s164
      %p168 = scmp.eq.s32.totalorder %s25, 0
      %p169 = por %p167, %p168
      %p170 = scmp.ne.s32.totalorder %s162, %s164
      %p171 = scmp.eq.s32.totalorder %s30, 1
      %p172 = por %p170, %p171
      %p173 = scmp.ne.s32.totalorder %s164, %s165
      %p174 = scmp.eq.s32.totalorder %s30, 0
      %p175 = por %p173, %p174
      %p176 = scmp.ne.s32.totalorder %s164, %s165
      %p177 = scmp.eq.s32.totalorder %s31, 1
      %p178 = por %p176, %p177
      %p180 = scmp.ne.s32.totalorder %s165, %s179
      %p181 = scmp.eq.s32.totalorder %s31, 0
      %p182 = por %p180, %p181
      %s184 = sadd.s32 %s183, 1
      %p187 = scmp.eq.s32.totalorder %s25, 1
      %p188 = scmp.ne.s32.totalorder %s183, %s185
      %p189 = scmp.eq.s32.totalorder %s25, 0
      %p190 = por %p188, %p189
      %p191 = scmp.ne.s32.totalorder %s183, %s185
      %p192 = scmp.eq.s32.totalorder %s30, 1
      %p193 = por %p191, %p192
      %p194 = scmp.ne.s32.totalorder %s185, %s186
      %p195 = scmp.eq.s32.totalorder %s30, 0
      %p196 = por %p194, %p195
      %p197 = scmp.ne.s32.totalorder %s185, %s186
      %p198 = scmp.eq.s32.totalorder %s31, 1
      %p199 = por %p197, %p198
      %p201 = scmp.ne.s32.totalorder %s186, %s200
      %p202 = scmp.eq.s32.totalorder %s31, 0
      %p203 = por %p201, %p202
      %s205 = sadd.s32 %s204, 1
      %p208 = scmp.eq.s32.totalorder %s25, 1
      %p209 = scmp.ne.s32.totalorder %s204, %s206
      %p210 = scmp.eq.s32.totalorder %s25, 0
      %p211 = por %p209, %p210
      %p212 = scmp.ne.s32.totalorder %s204, %s206
      %p213 = scmp.eq.s32.totalorder %s30, 1
      %p214 = por %p212, %p213
      %p215 = scmp.ne.s32.totalorder %s206, %s207
      %p216 = scmp.eq.s32.totalorder %s30, 0
      %p217 = por %p215, %p216
      %p218 = scmp.ne.s32.totalorder %s206, %s207
      %p219 = scmp.eq.s32.totalorder %s31, 1
      %p220 = por %p218, %p219
      %p222 = scmp.ne.s32.totalorder %s207, %s221
      %p223 = scmp.eq.s32.totalorder %s31, 0
      %p224 = por %p222, %p223
      %s225 = ssub.s32 %s32, %s44
      %p226 = scmp.eq.s32.totalorder %s225, 0
      %s228 = sadd.s32 %s227, 1
      %s229 = scalar_select %p226, %s227, %s228
      %p232 = pneg %p226
      %p233 = scmp.eq.s32.totalorder %s25, 1
      %p234 = por %p232, %p233
      %p235 = scmp.ne.s32.totalorder %s227, %s230
      %p236 = scmp.eq.s32.totalorder %s25, 0
      %p237 = por %p235, %p236
      %p238 = scmp.ne.s32.totalorder %s227, %s230
      %p239 = scmp.eq.s32.totalorder %s30, 1
      %p240 = por %p238, %p239
      %p241 = scmp.ne.s32.totalorder %s230, %s231
      %p242 = scmp.eq.s32.totalorder %s30, 0
      %p243 = por %p241, %p242
      %p244 = scmp.ne.s32.totalorder %s230, %s231
      %p245 = scmp.eq.s32.totalorder %s31, 1
      %p246 = por %p244, %p245
      %p248 = scmp.ne.s32.totalorder %s231, %s247
      %p249 = scmp.eq.s32.totalorder %s31, 0
      %p250 = por %p248, %p249
      %s251 = ssub.s32 %s32, %s44
      %s252 = ssub.s32 %s33, %s40
      %s253 = sor.u32 %s251, %s252
      %p254 = scmp.eq.s32.totalorder %s253, 0
      %s256 = sadd.s32 %s255, 1
      %s257 = scalar_select %p254, %s255, %s256
      %p260 = pneg %p254
      %p261 = scmp.eq.s32.totalorder %s25, 1
      %p262 = por %p260, %p261
      %p263 = scmp.ne.s32.totalorder %s255, %s258
      %p264 = scmp.eq.s32.totalorder %s25, 0
      %p265 = por %p263, %p264
      %p266 = scmp.ne.s32.totalorder %s255, %s258
      %p267 = scmp.eq.s32.totalorder %s30, 1
      %p268 = por %p266, %p267
      %p269 = scmp.ne.s32.totalorder %s258, %s259
      %p270 = scmp.eq.s32.totalorder %s30, 0
      %p271 = por %p269, %p270
      %p272 = scmp.ne.s32.totalorder %s258, %s259
      %p273 = scmp.eq.s32.totalorder %s31, 1
      %p274 = por %p272, %p273
      %p276 = scmp.ne.s32.totalorder %s259, %s275
      %p277 = scmp.eq.s32.totalorder %s31, 0
      %p278 = por %p276, %p277
      %s279 = ssub.s32 %s33, %s40
      %p280 = scmp.eq.s32.totalorder %s279, 0
      %s282 = sadd.s32 %s281, 1
      %s283 = scalar_select %p280, %s281, %s282
      %p286 = pneg %p280
      %p287 = scmp.eq.s32.totalorder %s25, 1
      %p288 = por %p286, %p287
      %p289 = scmp.ne.s32.totalorder %s281, %s284
      %p290 = scmp.eq.s32.totalorder %s25, 0
      %p291 = por %p289, %p290
      %p292 = scmp.ne.s32.totalorder %s281, %s284
      %p293 = scmp.eq.s32.totalorder %s30, 1
      %p294 = por %p292, %p293
      %p295 = scmp.ne.s32.totalorder %s284, %s285
      %p296 = scmp.eq.s32.totalorder %s30, 0
      %p297 = por %p295, %p296
      %p298 = scmp.ne.s32.totalorder %s284, %s285
      %p299 = scmp.eq.s32.totalorder %s31, 1
      %p300 = por %p298, %p299
      %p302 = scmp.ne.s32.totalorder %s285, %s301
      %p303 = scmp.eq.s32.totalorder %s31, 0
      %p304 = por %p302, %p303
      %s305 = ssub.s32 %s32, %s44
      %s306 = ssub.s32 %s33, %s40
      %s307 = sor.u32 %s305, %s306
      %p308 = scmp.eq.s32.totalorder %s307, 0
      %s310 = sadd.s32 %s309, 1
      %s311 = scalar_select %p308, %s309, %s310
      %p314 = pneg %p308
      %p315 = scmp.eq.s32.totalorder %s25, 1
      %p316 = por %p314, %p315
      %p317 = scmp.ne.s32.totalorder %s309, %s312
      %p318 = scmp.eq.s32.totalorder %s25, 0
      %p319 = por %p317, %p318
      %p320 = scmp.ne.s32.totalorder %s309, %s312
      %p321 = scmp.eq.s32.totalorder %s30, 1
      %p322 = por %p320, %p321
      %p323 = scmp.ne.s32.totalorder %s312, %s313
      %p324 = scmp.eq.s32.totalorder %s30, 0
      %p325 = por %p323, %p324
      %p326 = scmp.ne.s32.totalorder %s312, %s313
      %p327 = scmp.eq.s32.totalorder %s31, 1
      %p328 = por %p326, %p327
      %p330 = scmp.ne.s32.totalorder %s313, %s329
      %p331 = scmp.eq.s32.totalorder %s31, 0
      %p332 = por %p330, %p331
      %s333 = ssub.s32 %s32, %s44
      %s334 = ssub.s32 %s33, %s40
      %s335 = sor.u32 %s333, %s334
      %p336 = scmp.eq.s32.totalorder %s335, 0
      %s338 = sadd.s32 %s337, 1
      %s339 = scalar_select %p336, %s337, %s338
      %p342 = pneg %p336
      %p343 = scmp.eq.s32.totalorder %s25, 1
      %p344 = por %p342, %p343
      %p345 = scmp.ne.s32.totalorder %s337, %s340
      %p346 = scmp.eq.s32.totalorder %s25, 0
      %p347 = por %p345, %p346
      %p348 = scmp.ne.s32.totalorder %s337, %s340
      %p349 = scmp.eq.s32.totalorder %s30, 1
      %p350 = por %p348, %p349
      %p351 = scmp.ne.s32.totalorder %s340, %s341
      %p352 = scmp.eq.s32.totalorder %s30, 0
      %p353 = por %p351, %p352
      %p354 = scmp.ne.s32.totalorder %s340, %s341
      %p355 = scmp.eq.s32.totalorder %s31, 1
      %p356 = por %p354, %p355
      %p358 = scmp.ne.s32.totalorder %s341, %s357
      %p359 = scmp.eq.s32.totalorder %s31, 0
      %p360 = por %p358, %p359
      %p361 = scmp.le.s32.totalorder 1, %s25
      %p362 = scmp.lt.s32.totalorder %s25, 3
      %p363 = pnand %p361, %p362
      %p364 = pneg %p363
      // Predicated region
      $region9: #{tpu_custom_call.1} parent=5 // pred_check
        _
      $region10: #{tpu_custom_call.1} parent=5 // pred_check_branch
        %366 = sbr.rel (%p363) target = $region12
      $region11: #{tpu_custom_call.1} parent=5 // pred_region
        %s367 = ssub.s32 %s25, 1
        // Predicated region
        $region13: #{tpu_custom_call.1} parent=11 // pred_check
          %p368 = pneg %p112
        $region14: #{tpu_custom_call.1} parent=11 // pred_check_branch
          %370 = sbr.rel (%p368) target = $region16
        $region15: #{tpu_custom_call.1} parent=11 // pred_region
          _
        $region16: #{tpu_custom_call.1} parent=11 // pred_fallthru
          _
        // Predicated region
        $region17: #{tpu_custom_call.1} parent=11 // pred_check
          %p371 = pneg %p133
        $region18: #{tpu_custom_call.1} parent=11 // pred_check_branch
          %373 = sbr.rel (%p371) target = $region20
        $region19: #{tpu_custom_call.1} parent=11 // pred_region
          _
        $region20: #{tpu_custom_call.1} parent=11 // pred_fallthru
          _
        // Predicated region
        $region21: #{tpu_custom_call.1} parent=11 // pred_check
          %p374 = pneg %p154
        $region22: #{tpu_custom_call.1} parent=11 // pred_check_branch
          %376 = sbr.rel (%p374) target = $region24
        $region23: #{tpu_custom_call.1} parent=11 // pred_region
          _
        $region24: #{tpu_custom_call.1} parent=11 // pred_fallthru
          _
        // Predicated region
        $region25: #{tpu_custom_call.1} parent=11 // pred_check
          %p377 = pneg %p175
        $region26: #{tpu_custom_call.1} parent=11 // pred_check_branch
          %379 = sbr.rel (%p377) target = $region28
        $region27: #{tpu_custom_call.1} parent=11 // pred_region
          _
        $region28: #{tpu_custom_call.1} parent=11 // pred_fallthru
          _
        // Predicated region
        $region29: #{tpu_custom_call.1} parent=11 // pred_check
          %p380 = pneg %p196
        $region30: #{tpu_custom_call.1} parent=11 // pred_check_branch
          %382 = sbr.rel (%p380) target = $region32
        $region31: #{tpu_custom_call.1} parent=11 // pred_region
          _
        $region32: #{tpu_custom_call.1} parent=11 // pred_fallthru
          _
        // Predicated region
        $region33: #{tpu_custom_call.1} parent=11 // pred_check
          %p383 = pneg %p217
        $region34: #{tpu_custom_call.1} parent=11 // pred_check_branch
          %385 = sbr.rel (%p383) target = $region36
        $region35: #{tpu_custom_call.1} parent=11 // pred_region
          _
        $region36: #{tpu_custom_call.1} parent=11 // pred_fallthru
          _
        // Predicated region
        $region37: #{tpu_custom_call.1} parent=11 // pred_check
          %p386 = pneg %p297
        $region38: #{tpu_custom_call.1} parent=11 // pred_check_branch
          %388 = sbr.rel (%p386) target = $region40
        $region39: #{tpu_custom_call.1} parent=11 // pred_region
          %p389 = scmp.lt.s32.totalorder %s35, 0
          %s390 = scalar_select %p389, %s35, 0
          %s391 = smul.addr %s390, 8
          %s392 = scalar_lea.vmem %s10, %s391
        $region40: #{tpu_custom_call.1} parent=11 // pred_fallthru
          _
      $region12: #{tpu_custom_call.1} parent=5 // pred_fallthru
        _
      %p393 = scmp.lt.s32.totalorder %s25, 2
      // Predicated region
      $region41: #{tpu_custom_call.1} parent=5 // pred_check
        %p394 = pneg %p393
      $region42: #{tpu_custom_call.1} parent=5 // pred_check_branch
        %396 = sbr.rel (%p394) target = $region44
      $region43: #{tpu_custom_call.1} parent=5 // pred_region
        // Predicated region
        $region45: #{tpu_custom_call.1} parent=43 // pred_check
          %p397 = pneg %p59
        $region46: #{tpu_custom_call.1} parent=43 // pred_check_branch
          %399 = sbr.rel (%p397) target = $region48
        $region47: #{tpu_custom_call.1} parent=43 // pred_region
          %p400 = scmp.lt.s32.totalorder %s32, 1
          %s401 = scalar_select %p400, %s32, 1
          %p402 = scmp.lt.s32.totalorder %s33, 0
          %s403 = scalar_select %p402, %s33, 0
          %s404 = sadd.s32 %s403, %s401
          %s405 = smul.addr %s404, 8
          %s406 = scalar_lea.vmem %s0, %s405
        $region48: #{tpu_custom_call.1} parent=43 // pred_fallthru
          _
        // Predicated region
        $region49: #{tpu_custom_call.1} parent=43 // pred_check
          %p407 = pneg %p85
        $region50: #{tpu_custom_call.1} parent=43 // pred_check_branch
          %409 = sbr.rel (%p407) target = $region52
        $region51: #{tpu_custom_call.1} parent=43 // pred_region
          %p410 = scmp.lt.s32.totalorder %s32, 1
          %s411 = scalar_select %p410, %s32, 1
          %s412 = smul.addr %s411, 8
          %s413 = scalar_lea.vmem %s1, %s412
        $region52: #{tpu_custom_call.1} parent=43 // pred_fallthru
          _
        // Predicated region
        $region53: #{tpu_custom_call.1} parent=43 // pred_check
          %p414 = pneg %p237
        $region54: #{tpu_custom_call.1} parent=43 // pred_check_branch
          %416 = sbr.rel (%p414) target = $region56
        $region55: #{tpu_custom_call.1} parent=43 // pred_region
          %p417 = scmp.lt.s32.totalorder %s32, 1
          %s418 = scalar_select %p417, %s32, 1
          %s419 = scalar_lea.vmem %s8, %s418
        $region56: #{tpu_custom_call.1} parent=43 // pred_fallthru
          _
        // Predicated region
        $region57: #{tpu_custom_call.1} parent=43 // pred_check
          %p420 = pneg %p265
        $region58: #{tpu_custom_call.1} parent=43 // pred_check_branch
          %422 = sbr.rel (%p420) target = $region60
        $region59: #{tpu_custom_call.1} parent=43 // pred_region
          %p423 = scmp.lt.s32.totalorder %s32, 1
          %s424 = scalar_select %p423, %s32, 1
          %p425 = scmp.lt.s32.totalorder %s33, 0
          %s426 = scalar_select %p425, %s33, 0
          %s427 = sadd.s32 %s426, %s424
          %s428 = smul.addr %s427, 8
          %s429 = scalar_lea.vmem %s9, %s428
        $region60: #{tpu_custom_call.1} parent=43 // pred_fallthru
          _
      $region44: #{tpu_custom_call.1} parent=5 // pred_fallthru
        _
      %p430 = scmp.le.s32.totalorder 1, %s25
      %p431 = scmp.lt.s32.totalorder %s25, 3
      %p432 = pnand %p430, %p431
      %p433 = pneg %p432
      // Predicated region
      $region61: #{tpu_custom_call.1} parent=5 // pred_check
        _
      $region62: #{tpu_custom_call.1} parent=5 // pred_check_branch
        %435 = sbr.rel (%p432) target = $region64
      $region63: #{tpu_custom_call.1} parent=5 // pred_region
        %s436 = ssub.s32 %s25, 1
        %p437 = scmp.lt.s32.totalorder %s34, 1
        %s438 = scalar_select %p437, %s34, 1
        %p439 = scmp.lt.s32.totalorder %s35, 0
        %s440 = scalar_select %p439, %s35, 0
        %s441 = sadd.s32 %s440, %s438
        %s442 = smul.addr %s441, 8
        %s443 = scalar_lea.vmem %s0, %s442
        %p444 = pneg %p65
        %p445 = pneg %p62
        %p446 = scmp.lt.s32.totalorder %s34, 1
        %s447 = scalar_select %p446, %s34, 1
        %s448 = smul.addr %s447, 8
        %s449 = scalar_lea.vmem %s1, %s448
        %p450 = pneg %p91
        %p451 = pneg %p88
        %p452 = pneg %p112
        %p453 = pneg %p109
        %p454 = pneg %p133
        %p455 = pneg %p130
        %p456 = pneg %p154
        %p457 = pneg %p151
        %p458 = pneg %p175
        %p459 = pneg %p172
        %p460 = pneg %p196
        %p461 = pneg %p193
        %p462 = pneg %p217
        %p463 = pneg %p214
        %p464 = scmp.lt.s32.totalorder %s34, 1
        %s465 = scalar_select %p464, %s34, 1
        %s466 = scalar_lea.vmem %s8, %s465
        %p467 = pneg %p243
        %p468 = pneg %p240
        %p469 = scmp.lt.s32.totalorder %s34, 1
        %s470 = scalar_select %p469, %s34, 1
        %p471 = scmp.lt.s32.totalorder %s35, 0
        %s472 = scalar_select %p471, %s35, 0
        %s473 = sadd.s32 %s472, %s470
        %s474 = smul.addr %s473, 8
        %s475 = scalar_lea.vmem %s9, %s474
        %p476 = pneg %p271
        %p477 = pneg %p268
        %p478 = scmp.lt.s32.totalorder %s35, 0
        %s479 = scalar_select %p478, %s35, 0
        %s480 = smul.addr %s479, 8
        %s481 = scalar_lea.vmem %s10, %s480
        %p482 = pneg %p297
        %p483 = pneg %p294
        %p484 = pneg %p325
        %p485 = pneg %p322
        %s486 = sand.u32 %s312, 1
        %s487 = scalar_lea.sflag [#allocation3], %s486
        %s488 = sand.u32 %s312, 1
        %s489 = smul.addr %s488, 8
        %s490 = scalar_lea.vmem [#allocation2], %s489
        %p491 = pneg %p353
        %p492 = pneg %p350
        %s493 = sand.u32 %s340, 1
        %s494 = scalar_lea.sflag [#allocation5], %s493
        %s495 = sand.u32 %s340, 1
        %s496 = smul.addr %s495, 32
        %s497 = scalar_lea.vmem [#allocation4], %s496
        %p498 = scmp.lt.s32.totalorder %s34, 1
        %s499 = scalar_select %p498, %s34, 1
        %p500 = scmp.lt.s32.totalorder %s35, 0
        %s501 = scalar_select %p500, %s35, 0
        %s502 = sadd.s32 %s501, %s499
        %s503 = smul.addr %s502, 8
        %s504 = scalar_lea.vmem %s0, %s503
        %p505 = scmp.lt.s32.totalorder %s34, 1
        %s506 = scalar_select %p505, %s34, 1
        %s507 = smul.addr %s506, 8
        %s508 = scalar_lea.vmem %s1, %s507
        %p509 = scmp.lt.s32.totalorder %s34, 1
        %s510 = scalar_select %p509, %s34, 1
        %s511 = scalar_lea.vmem %s8, %s510
        %p512 = scmp.lt.s32.totalorder %s34, 1
        %s513 = scalar_select %p512, %s34, 1
        %p514 = scmp.lt.s32.totalorder %s35, 0
        %s515 = scalar_select %p514, %s35, 0
        %s516 = sadd.s32 %s515, %s513
        %s517 = smul.addr %s516, 8
        %s518 = scalar_lea.vmem %s9, %s517
        %p519 = scmp.lt.s32.totalorder %s35, 0
        %s520 = scalar_select %p519, %s35, 0
        %s521 = smul.addr %s520, 8
        %s522 = scalar_lea.vmem %s10, %s521
        %v524 = vld [vmem:[%s504] sm:$0xff]
        %v525 = vpack.c.bf16 %v524, %v524
        %v526 = vld [vmem:[%s508] sm:$0xff]
        %v527 = vpack.c.bf16 %v526, %v526
        %v528 = vld [vmem:[%s511] sm:$0x1]
        %vm529 = vcmp.gt.f32.partialorder %v528, 0.0
        %s530 = smul.u32 %s35, 8
        %v531 = vlaneseq
        %v532 = vshrl.u32 %v531, 7
        %v533 = vstv %s530
        %v534 = vadd.s32 %v533, %v532
        %v535 = vlaneseq
        %v536 = vand.u32 %v535, 127
        %vm537 = vcmp.le.s32.totalorder %v536, %v534
        %v538 = vsel %vm529, 1, 0
        %v539 = vlaneseq
        %v540 = vshrl.u32 %v539, 7
        %v541 = vsub.s32 0, %v540
        %v542 = vrot.slane %v538, %v541
        %vm543 = vcmp.eq.s32.totalorder %v542, 1
        %vm544 = vmand %vm543, %vm537
        %v545 = vld [vmem:[%s2] sm:$0xf]
        %v546 = vld [vmem:[%s2 + $0x4] sm:$0xf]
        %v547 = vld [vmem:[%s2 + $0x8] sm:$0xf]
        %v548 = vld [vmem:[%s2 + $0xc] sm:$0xf]
        %v553 = vunpack.c.l.b16 %v545
        %v554 = vunpack.c.l.b16 %v546
        %v555 = vunpack.c.l.b16 %v547
        %v556 = vunpack.c.l.b16 %v548
        %v557 = vpack.c.b16 %v554, %v553
        %v558 = vpack.c.b16 %v556, %v555
        %vm561 = vcmask 261120
        %v563 = vsel %vm561, %v525, 0
        %565 = vmatprep.subr.bf16.mxu0 0
        %566 = vmatpush1.bf16.msra.mxu0 %v557
        %567 = vmatprep.subr.bf16.mxu0 0
        %568 = vmatpush1.bf16.msra.mxu0 %v558
        %569 = vmatprep.subr.bf16.mxu0 0
        %570 = vmatpush1.bf16.msra.mxu0 0
        %571 = vmatprep.subr.bf16.mxu0 0
        %572 = vmatpush1.bf16.msra.mxu0 0
        %573 = vmatprep.subr.bf16.mxu0 0
        %574 = vmatpush1.bf16.msra.mxu0 0
        %575 = vmatprep.subr.bf16.mxu0 0
        %576 = vmatpush1.bf16.msra.mxu0 0
        %577 = vmatprep.subr.bf16.mxu0 0
        %578 = vmatpush1.bf16.msra.mxu0 0
        %579 = vmatprep.subr.bf16.mxu0 0
        %580 = vmatpush1.bf16.msra.mxu0 0
        %581 = vmatprep.subr.bf16.mxu0 0
        %582 = vmatpush1.bf16.msra.mxu0 0
        %583 = vmatprep.subr.bf16.mxu0 0
        %584 = vmatpush1.bf16.msra.mxu0 0
        %585 = vmatprep.subr.bf16.mxu0 0
        %586 = vmatpush1.bf16.msra.mxu0 0
        %587 = vmatprep.subr.bf16.mxu0 0
        %588 = vmatpush1.bf16.msra.mxu0 0
        %589 = vmatprep.subr.bf16.mxu0 0
        %590 = vmatpush1.bf16.msra.mxu0 0
        %591 = vmatprep.subr.bf16.mxu0 0
        %592 = vmatpush1.bf16.msra.mxu0 0
        %593 = vmatprep.subr.bf16.mxu0 0
        %594 = vmatpush1.bf16.msra.mxu0 0
        %595 = vmatprep.subr.bf16.mxu0 0
        %596 = vmatpush1.bf16.msra.mxu0 0
        %597 = vmatprep.mubr.bf16.mxu0 0
        %598 = vmatmul.mubr.bf16.gmra.mrb[0].mxu0 %v563
        %v599 = vpop.f32.mrb[0].mxu0
        %v600 = vadd.f32 0.0, %v599
        %v601 = vpop.f32.mrb[0].mxu0
        %v602 = vpop.f32.mrb[0].mxu0
        %v603 = vpop.f32.mrb[0].mxu0
        %604 = vdwg.mxu0
        %v605 = vmul.f32 %v600, 0.35355338
        %v606 = vld [vmem:[%s3] sm:$0xf]
        %v607 = vld [vmem:[%s3 + $0x4] sm:$0xf]
        %v608 = vld [vmem:[%s3 + $0x8] sm:$0xf]
        %v609 = vld [vmem:[%s3 + $0xc] sm:$0xf]
        %v614 = vunpack.c.l.b16 %v606
        %v615 = vunpack.c.l.b16 %v607
        %v616 = vunpack.c.l.b16 %v608
        %v617 = vunpack.c.l.b16 %v609
        %v618 = vpack.c.b16 %v615, %v614
        %v619 = vpack.c.b16 %v617, %v616
        %v623 = vsel %vm561, %v527, 0
        %625 = vmatprep.subr.bf16.mxu0 0
        %626 = vmatpush1.bf16.msra.mxu0 %v618
        %627 = vmatprep.subr.bf16.mxu0 0
        %628 = vmatpush1.bf16.msra.mxu0 %v619
        %629 = vmatprep.subr.bf16.mxu0 0
        %630 = vmatpush1.bf16.msra.mxu0 0
        %631 = vmatprep.subr.bf16.mxu0 0
        %632 = vmatpush1.bf16.msra.mxu0 0
        %633 = vmatprep.subr.bf16.mxu0 0
        %634 = vmatpush1.bf16.msra.mxu0 0
        %635 = vmatprep.subr.bf16.mxu0 0
        %636 = vmatpush1.bf16.msra.mxu0 0
        %637 = vmatprep.subr.bf16.mxu0 0
        %638 = vmatpush1.bf16.msra.mxu0 0
        %639 = vmatprep.subr.bf16.mxu0 0
        %640 = vmatpush1.bf16.msra.mxu0 0
        %641 = vmatprep.subr.bf16.mxu0 0
        %642 = vmatpush1.bf16.msra.mxu0 0
        %643 = vmatprep.subr.bf16.mxu0 0
        %644 = vmatpush1.bf16.msra.mxu0 0
        %645 = vmatprep.subr.bf16.mxu0 0
        %646 = vmatpush1.bf16.msra.mxu0 0
        %647 = vmatprep.subr.bf16.mxu0 0
        %648 = vmatpush1.bf16.msra.mxu0 0
        %649 = vmatprep.subr.bf16.mxu0 0
        %650 = vmatpush1.bf16.msra.mxu0 0
        %651 = vmatprep.subr.bf16.mxu0 0
        %652 = vmatpush1.bf16.msra.mxu0 0
        %653 = vmatprep.subr.bf16.mxu0 0
        %654 = vmatpush1.bf16.msra.mxu0 0
        %655 = vmatprep.subr.bf16.mxu0 0
        %656 = vmatpush1.bf16.msra.mxu0 0
        %657 = vmatprep.mubr.bf16.mxu0 0
        %658 = vmatmul.mubr.bf16.gmra.mrb[0].mxu0 %v623
        %v659 = vpop.f32.mrb[0].mxu0
        %v660 = vadd.f32 0.0, %v659
        %v661 = vpop.f32.mrb[0].mxu0
        %v662 = vpop.f32.mrb[0].mxu0
        %v663 = vpop.f32.mrb[0].mxu0
        %664 = vdwg.mxu0
        %v665 = vld [vmem:[%s4] sm:$0xf]
        %v666 = vld [vmem:[%s4 + $0x4] sm:$0xf]
        %v667 = vld [vmem:[%s4 + $0x8] sm:$0xf]
        %v668 = vld [vmem:[%s4 + $0xc] sm:$0xf]
        %v673 = vunpack.c.l.b16 %v665
        %v674 = vunpack.c.l.b16 %v666
        %v675 = vunpack.c.l.b16 %v667
        %v676 = vunpack.c.l.b16 %v668
        %v677 = vpack.c.b16 %v674, %v673
        %v678 = vpack.c.b16 %v676, %v675
        %681 = vmatprep.subr.bf16.mxu0 0
        %682 = vmatpush1.bf16.msra.mxu0 %v677
        %683 = vmatprep.subr.bf16.mxu0 0
        %684 = vmatpush1.bf16.msra.mxu0 %v678
        %685 = vmatprep.subr.bf16.mxu0 0
        %686 = vmatpush1.bf16.msra.mxu0 0
        %687 = vmatprep.subr.bf16.mxu0 0
        %688 = vmatpush1.bf16.msra.mxu0 0
        %689 = vmatprep.subr.bf16.mxu0 0
        %690 = vmatpush1.bf16.msra.mxu0 0
        %691 = vmatprep.subr.bf16.mxu0 0
        %692 = vmatpush1.bf16.msra.mxu0 0
        %693 = vmatprep.subr.bf16.mxu0 0
        %694 = vmatpush1.bf16.msra.mxu0 0
        %695 = vmatprep.subr.bf16.mxu0 0
        %696 = vmatpush1.bf16.msra.mxu0 0
        %697 = vmatprep.subr.bf16.mxu0 0
        %698 = vmatpush1.bf16.msra.mxu0 0
        %699 = vmatprep.subr.bf16.mxu0 0
        %700 = vmatpush1.bf16.msra.mxu0 0
        %701 = vmatprep.subr.bf16.mxu0 0
        %702 = vmatpush1.bf16.msra.mxu0 0
        %703 = vmatprep.subr.bf16.mxu0 0
        %704 = vmatpush1.bf16.msra.mxu0 0
        %705 = vmatprep.subr.bf16.mxu0 0
        %706 = vmatpush1.bf16.msra.mxu0 0
        %707 = vmatprep.subr.bf16.mxu0 0
        %708 = vmatpush1.bf16.msra.mxu0 0
        %709 = vmatprep.subr.bf16.mxu0 0
        %710 = vmatpush1.bf16.msra.mxu0 0
        %711 = vmatprep.subr.bf16.mxu0 0
        %712 = vmatpush1.bf16.msra.mxu0 0
        %713 = vmatprep.mubr.bf16.mxu0 0
        %714 = vmatmul.mubr.bf16.gmra.mrb[0].mxu0 %v623
        %v715 = vpop.f32.mrb[0].mxu0
        %v716 = vadd.f32 0.0, %v715
        %v717 = vpop.f32.mrb[0].mxu0
        %v718 = vpop.f32.mrb[0].mxu0
        %v719 = vpop.f32.mrb[0].mxu0
        %720 = vdwg.mxu0
        %v721 = vpack.c.bf16 %v605, %v605
        %v722 = vpack.c.bf16 %v660, %v660
        %v723 = vld [vmem:[%s522] sm:$0xff]
        %vm724 = vcmask 64512
        %v726 = vsel %vm724, %v721, 0
        %v729 = vsel %vm724, %v722, 0
        %731 = vmatprep.subr.bf16.mxu0 0
        %732 = vmatpush1.bf16.xpose.msra.mxu0 %v729
        %733 = vmatprep.subr.bf16.mxu0 0
        %734 = vmatpush1.bf16.xpose.msra.mxu0 0
        %735 = vmatprep.subr.bf16.mxu0 0
        %736 = vmatpush1.bf16.xpose.msra.mxu0 0
        %737 = vmatprep.subr.bf16.mxu0 0
        %738 = vmatpush1.bf16.xpose.msra.mxu0 0
        %739 = vmatprep.subr.bf16.mxu0 0
        %740 = vmatpush1.bf16.xpose.msra.mxu0 0
        %741 = vmatprep.subr.bf16.mxu0 0
        %742 = vmatpush1.bf16.xpose.msra.mxu0 0
        %743 = vmatprep.subr.bf16.mxu0 0
        %744 = vmatpush1.bf16.xpose.msra.mxu0 0
        %745 = vmatprep.subr.bf16.mxu0 0
        %746 = vmatpush1.bf16.xpose.msra.mxu0 0
        %747 = vmatprep.subr.bf16.mxu0 0
        %748 = vmatpush1.bf16.xpose.msra.mxu0 0
        %749 = vmatprep.subr.bf16.mxu0 0
        %750 = vmatpush1.bf16.xpose.msra.mxu0 0
        %751 = vmatprep.subr.bf16.mxu0 0
        %752 = vmatpush1.bf16.xpose.msra.mxu0 0
        %753 = vmatprep.subr.bf16.mxu0 0
        %754 = vmatpush1.bf16.xpose.msra.mxu0 0
        %755 = vmatprep.subr.bf16.mxu0 0
        %756 = vmatpush1.bf16.xpose.msra.mxu0 0
        %757 = vmatprep.subr.bf16.mxu0 0
        %758 = vmatpush1.bf16.xpose.msra.mxu0 0
        %759 = vmatprep.subr.bf16.mxu0 0
        %760 = vmatpush1.bf16.xpose.msra.mxu0 0
        %761 = vmatprep.subr.bf16.mxu0 0
        %762 = vmatpush1.bf16.xpose.msra.mxu0 0
        %763 = vmatprep.mubr.bf16.mxu0 0
        %764 = vmatmul.mubr.bf16.gmra.mrb[0].mxu0 %v726
        %v765 = vpop.f32.mrb[0].mxu0
        %v766 = vadd.f32 %v723, %v765
        %v767 = vpop.f32.mrb[0].mxu0
        %v768 = vpop.f32.mrb[0].mxu0
        %v769 = vpop.f32.mrb[0].mxu0
        %770 = vdwg.mxu0
        %v771 = vsel %vm544, %v766, -1e+09
        %v772 = vsel %vm724, %v771, -inf
        %773 = vmax.xlane.f32.xlu0 %v772
        %v774 = vpop.xlane.xlu0 %773
        %v775 = vsub.f32 %v771, %v774
        %v776 = vmul.f32 %v775, 1.442695
        %v777 = vpow.pop %v776
        %v778 = vsel %vm724, %v777, 0.0
        %779 = vadd.xlane.f32.xlu0 %v778
        %v780 = vpop.xlane.xlu0 %779
        %v781 = vrcp.pop %v780
        %v782 = vmul.f32 %v777, %v781
        %783 = vst.msk [vmem:[%s497] sm:$0xff] %vm724, %v782
        %v784 = vpack.c.bf16 %v782, %v782
        %v785 = vpack.c.bf16 %v716, %v716
        %v787 = vsel %vm724, %v784, 0
        %vm789 = vcmask 1043456
        %v791 = vsel %vm789, %v785, 0
        %793 = vmatprep.subr.bf16.mxu0 0
        %794 = vmatpush1.bf16.msra.mxu0 %v791
        %795 = vmatprep.subr.bf16.mxu0 0
        %796 = vmatpush1.bf16.msra.mxu0 0
        %797 = vmatprep.subr.bf16.mxu0 0
        %798 = vmatpush1.bf16.msra.mxu0 0
        %799 = vmatprep.subr.bf16.mxu0 0
        %800 = vmatpush1.bf16.msra.mxu0 0
        %801 = vmatprep.subr.bf16.mxu0 0
        %802 = vmatpush1.bf16.msra.mxu0 0
        %803 = vmatprep.subr.bf16.mxu0 0
        %804 = vmatpush1.bf16.msra.mxu0 0
        %805 = vmatprep.subr.bf16.mxu0 0
        %806 = vmatpush1.bf16.msra.mxu0 0
        %807 = vmatprep.subr.bf16.mxu0 0
        %808 = vmatpush1.bf16.msra.mxu0 0
        %809 = vmatprep.subr.bf16.mxu0 0
        %810 = vmatpush1.bf16.msra.mxu0 0
        %811 = vmatprep.subr.bf16.mxu0 0
        %812 = vmatpush1.bf16.msra.mxu0 0
        %813 = vmatprep.subr.bf16.mxu0 0
        %814 = vmatpush1.bf16.msra.mxu0 0
        %815 = vmatprep.subr.bf16.mxu0 0
        %816 = vmatpush1.bf16.msra.mxu0 0
        %817 = vmatprep.subr.bf16.mxu0 0
        %818 = vmatpush1.bf16.msra.mxu0 0
        %819 = vmatprep.subr.bf16.mxu0 0
        %820 = vmatpush1.bf16.msra.mxu0 0
        %821 = vmatprep.subr.bf16.mxu0 0
        %822 = vmatpush1.bf16.msra.mxu0 0
        %823 = vmatprep.subr.bf16.mxu0 0
        %824 = vmatpush1.bf16.msra.mxu0 0
        %825 = vmatprep.mubr.bf16.mxu0 0
        %826 = vmatmul.mubr.bf16.gmra.mrb[0].mxu0 %v787
        %v827 = vpop.f32.mrb[0].mxu0
        %v828 = vadd.f32 0.0, %v827
        %v829 = vpop.f32.mrb[0].mxu0
        %v830 = vpop.f32.mrb[0].mxu0
        %v831 = vpop.f32.mrb[0].mxu0
        %832 = vdwg.mxu0
        %v833 = vpack.c.bf16 %v828, %v828
        %v834 = vld [vmem:[%s5] sm:$0xf]
        %s835 = scalar_lea.vmem %s2, 16
        %v836 = vld [vmem:[%s835] sm:$0xf]
        %v837 = vld [vmem:[%s835 + $0x4] sm:$0xf]
        %v838 = vld [vmem:[%s835 + $0x8] sm:$0xf]
        %v839 = vld [vmem:[%s835 + $0xc] sm:$0xf]
        %v844 = vunpack.c.l.b16 %v836
        %v845 = vunpack.c.l.b16 %v837
        %v846 = vunpack.c.l.b16 %v838
        %v847 = vunpack.c.l.b16 %v839
        %v848 = vpack.c.b16 %v845, %v844
        %v849 = vpack.c.b16 %v847, %v846
        %852 = vmatprep.subr.bf16.mxu0 0
        %853 = vmatpush1.bf16.msra.mxu0 %v848
        %854 = vmatprep.subr.bf16.mxu0 0
        %855 = vmatpush1.bf16.msra.mxu0 %v849
        %856 = vmatprep.subr.bf16.mxu0 0
        %857 = vmatpush1.bf16.msra.mxu0 0
        %858 = vmatprep.subr.bf16.mxu0 0
        %859 = vmatpush1.bf16.msra.mxu0 0
        %860 = vmatprep.subr.bf16.mxu0 0
        %861 = vmatpush1.bf16.msra.mxu0 0
        %862 = vmatprep.subr.bf16.mxu0 0
        %863 = vmatpush1.bf16.msra.mxu0 0
        %864 = vmatprep.subr.bf16.mxu0 0
        %865 = vmatpush1.bf16.msra.mxu0 0
        %866 = vmatprep.subr.bf16.mxu0 0
        %867 = vmatpush1.bf16.msra.mxu0 0
        %868 = vmatprep.subr.bf16.mxu0 0
        %869 = vmatpush1.bf16.msra.mxu0 0
        %870 = vmatprep.subr.bf16.mxu0 0
        %871 = vmatpush1.bf16.msra.mxu0 0
        %872 = vmatprep.subr.bf16.mxu0 0
        %873 = vmatpush1.bf16.msra.mxu0 0
        %874 = vmatprep.subr.bf16.mxu0 0
        %875 = vmatpush1.bf16.msra.mxu0 0
        %876 = vmatprep.subr.bf16.mxu0 0
        %877 = vmatpush1.bf16.msra.mxu0 0
        %878 = vmatprep.subr.bf16.mxu0 0
        %879 = vmatpush1.bf16.msra.mxu0 0
        %880 = vmatprep.subr.bf16.mxu0 0
        %881 = vmatpush1.bf16.msra.mxu0 0
        %882 = vmatprep.subr.bf16.mxu0 0
        %883 = vmatpush1.bf16.msra.mxu0 0
        %884 = vmatprep.mubr.bf16.mxu0 0
        %885 = vmatmul.mubr.bf16.gmra.mrb[0].mxu0 %v563
        %v886 = vpop.f32.mrb[0].mxu0
        %v887 = vadd.f32 0.0, %v886
        %v888 = vpop.f32.mrb[0].mxu0
        %v889 = vpop.f32.mrb[0].mxu0
        %v890 = vpop.f32.mrb[0].mxu0
        %891 = vdwg.mxu0
        %v892 = vmul.f32 %v887, 0.35355338
        %s893 = scalar_lea.vmem %s3, 16
        %v894 = vld [vmem:[%s893] sm:$0xf]
        %v895 = vld [vmem:[%s893 + $0x4] sm:$0xf]
        %v896 = vld [vmem:[%s893 + $0x8] sm:$0xf]
        %v897 = vld [vmem:[%s893 + $0xc] sm:$0xf]
        %v902 = vunpack.c.l.b16 %v894
        %v903 = vunpack.c.l.b16 %v895
        %v904 = vunpack.c.l.b16 %v896
        %v905 = vunpack.c.l.b16 %v897
        %v906 = vpack.c.b16 %v903, %v902
        %v907 = vpack.c.b16 %v905, %v904
        %910 = vmatprep.subr.bf16.mxu0 0
        %911 = vmatpush1.bf16.msra.mxu0 %v906
        %912 = vmatprep.subr.bf16.mxu0 0
        %913 = vmatpush1.bf16.msra.mxu0 %v907
        %914 = vmatprep.subr.bf16.mxu0 0
        %915 = vmatpush1.bf16.msra.mxu0 0
        %916 = vmatprep.subr.bf16.mxu0 0
        %917 = vmatpush1.bf16.msra.mxu0 0
        %918 = vmatprep.subr.bf16.mxu0 0
        %919 = vmatpush1.bf16.msra.mxu0 0
        %920 = vmatprep.subr.bf16.mxu0 0
        %921 = vmatpush1.bf16.msra.mxu0 0
        %922 = vmatprep.subr.bf16.mxu0 0
        %923 = vmatpush1.bf16.msra.mxu0 0
        %924 = vmatprep.subr.bf16.mxu0 0
        %925 = vmatpush1.bf16.msra.mxu0 0
        %926 = vmatprep.subr.bf16.mxu0 0
        %927 = vmatpush1.bf16.msra.mxu0 0
        %928 = vmatprep.subr.bf16.mxu0 0
        %929 = vmatpush1.bf16.msra.mxu0 0
        %930 = vmatprep.subr.bf16.mxu0 0
        %931 = vmatpush1.bf16.msra.mxu0 0
        %932 = vmatprep.subr.bf16.mxu0 0
        %933 = vmatpush1.bf16.msra.mxu0 0
        %934 = vmatprep.subr.bf16.mxu0 0
        %935 = vmatpush1.bf16.msra.mxu0 0
        %936 = vmatprep.subr.bf16.mxu0 0
        %937 = vmatpush1.bf16.msra.mxu0 0
        %938 = vmatprep.subr.bf16.mxu0 0
        %939 = vmatpush1.bf16.msra.mxu0 0
        %940 = vmatprep.subr.bf16.mxu0 0
        %941 = vmatpush1.bf16.msra.mxu0 0
        %942 = vmatprep.mubr.bf16.mxu0 0
        %943 = vmatmul.mubr.bf16.gmra.mrb[0].mxu0 %v623
        %v944 = vpop.f32.mrb[0].mxu0
        %v945 = vadd.f32 0.0, %v944
        %v946 = vpop.f32.mrb[0].mxu0
        %v947 = vpop.f32.mrb[0].mxu0
        %v948 = vpop.f32.mrb[0].mxu0
        %949 = vdwg.mxu0
        %s950 = scalar_lea.vmem %s4, 16
        %v951 = vld [vmem:[%s950] sm:$0xf]
        %v952 = vld [vmem:[%s950 + $0x4] sm:$0xf]
        %v953 = vld [vmem:[%s950 + $0x8] sm:$0xf]
        %v954 = vld [vmem:[%s950 + $0xc] sm:$0xf]
        %v959 = vunpack.c.l.b16 %v951
        %v960 = vunpack.c.l.b16 %v952
        %v961 = vunpack.c.l.b16 %v953
        %v962 = vunpack.c.l.b16 %v954
        %v963 = vpack.c.b16 %v960, %v959
        %v964 = vpack.c.b16 %v962, %v961
        %967 = vmatprep.subr.bf16.mxu0 0
        %968 = vmatpush1.bf16.msra.mxu0 %v963
        %969 = vmatprep.subr.bf16.mxu0 0
        %970 = vmatpush1.bf16.msra.mxu0 %v964
        %971 = vmatprep.subr.bf16.mxu0 0
        %972 = vmatpush1.bf16.msra.mxu0 0
        %973 = vmatprep.subr.bf16.mxu0 0
        %974 = vmatpush1.bf16.msra.mxu0 0
        %975 = vmatprep.subr.bf16.mxu0 0
        %976 = vmatpush1.bf16.msra.mxu0 0
        %977 = vmatprep.subr.bf16.mxu0 0
        %978 = vmatpush1.bf16.msra.mxu0 0
        %979 = vmatprep.subr.bf16.mxu0 0
        %980 = vmatpush1.bf16.msra.mxu0 0
        %981 = vmatprep.subr.bf16.mxu0 0
        %982 = vmatpush1.bf16.msra.mxu0 0
        %983 = vmatprep.subr.bf16.mxu0 0
        %984 = vmatpush1.bf16.msra.mxu0 0
        %985 = vmatprep.subr.bf16.mxu0 0
        %986 = vmatpush1.bf16.msra.mxu0 0
        %987 = vmatprep.subr.bf16.mxu0 0
        %988 = vmatpush1.bf16.msra.mxu0 0
        %989 = vmatprep.subr.bf16.mxu0 0
        %990 = vmatpush1.bf16.msra.mxu0 0
        %991 = vmatprep.subr.bf16.mxu0 0
        %992 = vmatpush1.bf16.msra.mxu0 0
        %993 = vmatprep.subr.bf16.mxu0 0
        %994 = vmatpush1.bf16.msra.mxu0 0
        %995 = vmatprep.subr.bf16.mxu0 0
        %996 = vmatpush1.bf16.msra.mxu0 0
        %997 = vmatprep.subr.bf16.mxu0 0
        %998 = vmatpush1.bf16.msra.mxu0 0
        %999 = vmatprep.mubr.bf16.mxu0 0
        %1000 = vmatmul.mubr.bf16.gmra.mrb[0].mxu0 %v623
        %v1001 = vpop.f32.mrb[0].mxu0
        %v1002 = vadd.f32 0.0, %v1001
        %v1003 = vpop.f32.mrb[0].mxu0
        %v1004 = vpop.f32.mrb[0].mxu0
        %v1005 = vpop.f32.mrb[0].mxu0
        %1006 = vdwg.mxu0
        %v1007 = vpack.c.bf16 %v892, %v892
        %v1008 = vpack.c.bf16 %v945, %v945
        %s1009 = scalar_lea.vmem %s522, 8
        %v1010 = vld [vmem:[%s1009] sm:$0xff]
        %v1012 = vsel %vm724, %v1007, 0
        %v1015 = vsel %vm724, %v1008, 0
        %1017 = vmatprep.subr.bf16.mxu0 0
        %1018 = vmatpush1.bf16.xpose.msra.mxu0 %v1015
        %1019 = vmatprep.subr.bf16.mxu0 0
        %1020 = vmatpush1.bf16.xpose.msra.mxu0 0
        %1021 = vmatprep.subr.bf16.mxu0 0
        %1022 = vmatpush1.bf16.xpose.msra.mxu0 0
        %1023 = vmatprep.subr.bf16.mxu0 0
        %1024 = vmatpush1.bf16.xpose.msra.mxu0 0
        %1025 = vmatprep.subr.bf16.mxu0 0
        %1026 = vmatpush1.bf16.xpose.msra.mxu0 0
        %1027 = vmatprep.subr.bf16.mxu0 0
        %1028 = vmatpush1.bf16.xpose.msra.mxu0 0
        %1029 = vmatprep.subr.bf16.mxu0 0
        %1030 = vmatpush1.bf16.xpose.msra.mxu0 0
        %1031 = vmatprep.subr.bf16.mxu0 0
        %1032 = vmatpush1.bf16.xpose.msra.mxu0 0
        %1033 = vmatprep.subr.bf16.mxu0 0
        %1034 = vmatpush1.bf16.xpose.msra.mxu0 0
        %1035 = vmatprep.subr.bf16.mxu0 0
        %1036 = vmatpush1.bf16.xpose.msra.mxu0 0
        %1037 = vmatprep.subr.bf16.mxu0 0
        %1038 = vmatpush1.bf16.xpose.msra.mxu0 0
        %1039 = vmatprep.subr.bf16.mxu0 0
        %1040 = vmatpush1.bf16.xpose.msra.mxu0 0
        %1041 = vmatprep.subr.bf16.mxu0 0
        %1042 = vmatpush1.bf16.xpose.msra.mxu0 0
        %1043 = vmatprep.subr.bf16.mxu0 0
        %1044 = vmatpush1.bf16.xpose.msra.mxu0 0
        %1045 = vmatprep.subr.bf16.mxu0 0
        %1046 = vmatpush1.bf16.xpose.msra.mxu0 0
        %1047 = vmatprep.subr.bf16.mxu0 0
        %1048 = vmatpush1.bf16.xpose.msra.mxu0 0
        %1049 = vmatprep.mubr.bf16.mxu0 0
        %1050 = vmatmul.mubr.bf16.gmra.mrb[0].mxu0 %v1012
        %v1051 = vpop.f32.mrb[0].mxu0
        %v1052 = vadd.f32 %v1010, %v1051
        %v1053 = vpop.f32.mrb[0].mxu0
        %v1054 = vpop.f32.mrb[0].mxu0
        %v1055 = vpop.f32.mrb[0].mxu0
        %1056 = vdwg.mxu0
        %v1057 = vsel %vm544, %v1052, -1e+09
        %v1058 = vsel %vm724, %v1057, -inf
        %1059 = vmax.xlane.f32.xlu0 %v1058
        %v1060 = vpop.xlane.xlu0 %1059
        %v1061 = vsub.f32 %v1057, %v1060
        %v1062 = vmul.f32 %v1061, 1.442695
        %v1063 = vpow.pop %v1062
        %v1064 = vsel %vm724, %v1063, 0.0
        %1065 = vadd.xlane.f32.xlu0 %v1064
        %v1066 = vpop.xlane.xlu0 %1065
        %v1067 = vrcp.pop %v1066
        %v1068 = vmul.f32 %v1063, %v1067
        %s1069 = scalar_lea.vmem %s497, 8 [#allocation4]
        %1070 = vst.msk [vmem:[%s1069] sm:$0xff] %vm724, %v1068
        %v1071 = vpack.c.bf16 %v1068, %v1068
        %v1072 = vpack.c.bf16 %v1002, %v1002
        %v1074 = vsel %vm724, %v1071, 0
        %v1077 = vsel %vm789, %v1072, 0
        %1079 = vmatprep.subr.bf16.mxu0 0
        %1080 = vmatpush1.bf16.msra.mxu0 %v1077
        %1081 = vmatprep.subr.bf16.mxu0 0
        %1082 = vmatpush1.bf16.msra.mxu0 0
        %1083 = vmatprep.subr.bf16.mxu0 0
        %1084 = vmatpush1.bf16.msra.mxu0 0
        %1085 = vmatprep.subr.bf16.mxu0 0
        %1086 = vmatpush1.bf16.msra.mxu0 0
        %1087 = vmatprep.subr.bf16.mxu0 0
        %1088 = vmatpush1.bf16.msra.mxu0 0
        %1089 = vmatprep.subr.bf16.mxu0 0
        %1090 = vmatpush1.bf16.msra.mxu0 0
        %1091 = vmatprep.subr.bf16.mxu0 0
        %1092 = vmatpush1.bf16.msra.mxu0 0
        %1093 = vmatprep.subr.bf16.mxu0 0
        %1094 = vmatpush1.bf16.msra.mxu0 0
        %1095 = vmatprep.subr.bf16.mxu0 0
        %1096 = vmatpush1.bf16.msra.mxu0 0
        %1097 = vmatprep.subr.bf16.mxu0 0
        %1098 = vmatpush1.bf16.msra.mxu0 0
        %1099 = vmatprep.subr.bf16.mxu0 0
        %1100 = vmatpush1.bf16.msra.mxu0 0
        %1101 = vmatprep.subr.bf16.mxu0 0
        %1102 = vmatpush1.bf16.msra.mxu0 0
        %1103 = vmatprep.subr.bf16.mxu0 0
        %1104 = vmatpush1.bf16.msra.mxu0 0
        %1105 = vmatprep.subr.bf16.mxu0 0
        %1106 = vmatpush1.bf16.msra.mxu0 0
        %1107 = vmatprep.subr.bf16.mxu0 0
        %1108 = vmatpush1.bf16.msra.mxu0 0
        %1109 = vmatprep.subr.bf16.mxu0 0
        %1110 = vmatpush1.bf16.msra.mxu0 0
        %1111 = vmatprep.mubr.bf16.mxu0 0
        %1112 = vmatmul.mubr.bf16.gmra.mrb[0].mxu0 %v1074
        %v1113 = vpop.f32.mrb[0].mxu0
        %v1114 = vadd.f32 0.0, %v1113
        %v1115 = vpop.f32.mrb[0].mxu0
        %v1116 = vpop.f32.mrb[0].mxu0
        %v1117 = vpop.f32.mrb[0].mxu0
        %1118 = vdwg.mxu0
        %v1119 = vpack.c.bf16 %v1114, %v1114
        %s1120 = scalar_lea.vmem %s5, 4
        %v1121 = vld [vmem:[%s1120] sm:$0xf]
        %v1123 = vsel %vm724, %v1119, 0
        %v1126 = vsel %vm789, %v1121, 0
        %1128 = vmatprep.subr.bf16.mxu0 0
        %1129 = vmatpush1.bf16.msra.mxu0 %v1126
        %1130 = vmatprep.subr.bf16.mxu0 0
        %1131 = vmatpush1.bf16.msra.mxu0 0
        %1132 = vmatprep.subr.bf16.mxu0 0
        %1133 = vmatpush1.bf16.msra.mxu0 0
        %1134 = vmatprep.subr.bf16.mxu0 0
        %1135 = vmatpush1.bf16.msra.mxu0 0
        %1136 = vmatprep.subr.bf16.mxu0 0
        %1137 = vmatpush1.bf16.msra.mxu0 0
        %1138 = vmatprep.subr.bf16.mxu0 0
        %1139 = vmatpush1.bf16.msra.mxu0 0
        %1140 = vmatprep.subr.bf16.mxu0 0
        %1141 = vmatpush1.bf16.msra.mxu0 0
        %1142 = vmatprep.subr.bf16.mxu0 0
        %1143 = vmatpush1.bf16.msra.mxu0 0
        %1144 = vmatprep.subr.bf16.mxu0 0
        %1145 = vmatpush1.bf16.msra.mxu0 0
        %1146 = vmatprep.subr.bf16.mxu0 0
        %1147 = vmatpush1.bf16.msra.mxu0 0
        %1148 = vmatprep.subr.bf16.mxu0 0
        %1149 = vmatpush1.bf16.msra.mxu0 0
        %1150 = vmatprep.subr.bf16.mxu0 0
        %1151 = vmatpush1.bf16.msra.mxu0 0
        %1152 = vmatprep.subr.bf16.mxu0 0
        %1153 = vmatpush1.bf16.msra.mxu0 0
        %1154 = vmatprep.subr.bf16.mxu0 0
        %1155 = vmatpush1.bf16.msra.mxu0 0
        %1156 = vmatprep.subr.bf16.mxu0 0
        %1157 = vmatpush1.bf16.msra.mxu0 0
        %1158 = vmatprep.subr.bf16.mxu0 0
        %1159 = vmatpush1.bf16.msra.mxu0 0
        %1160 = vmatprep.mubr.bf16.mxu0 0
        %1161 = vmatmul.mubr.bf16.gmra.mrb[0].mxu0 %v1123
        %v1162 = vpop.f32.mrb[0].mxu0
        %v1163 = vadd.f32 0.0, %v1162
        %v1164 = vpop.f32.mrb[0].mxu0
        %v1165 = vpop.f32.mrb[0].mxu0
        %v1166 = vpop.f32.mrb[0].mxu0
        %1167 = vdwg.mxu0
        %v1169 = vsel %vm724, %v833, 0
        %v1172 = vsel %vm789, %v834, 0
        %1174 = vmatprep.subr.bf16.mxu0 0
        %1175 = vmatpush1.bf16.msra.mxu0 %v1172
        %1176 = vmatprep.subr.bf16.mxu0 0
        %1177 = vmatpush1.bf16.msra.mxu0 0
        %1178 = vmatprep.subr.bf16.mxu0 0
        %1179 = vmatpush1.bf16.msra.mxu0 0
        %1180 = vmatprep.subr.bf16.mxu0 0
        %1181 = vmatpush1.bf16.msra.mxu0 0
        %1182 = vmatprep.subr.bf16.mxu0 0
        %1183 = vmatpush1.bf16.msra.mxu0 0
        %1184 = vmatprep.subr.bf16.mxu0 0
        %1185 = vmatpush1.bf16.msra.mxu0 0
        %1186 = vmatprep.subr.bf16.mxu0 0
        %1187 = vmatpush1.bf16.msra.mxu0 0
        %1188 = vmatprep.subr.bf16.mxu0 0
        %1189 = vmatpush1.bf16.msra.mxu0 0
        %1190 = vmatprep.subr.bf16.mxu0 0
        %1191 = vmatpush1.bf16.msra.mxu0 0
        %1192 = vmatprep.subr.bf16.mxu0 0
        %1193 = vmatpush1.bf16.msra.mxu0 0
        %1194 = vmatprep.subr.bf16.mxu0 0
        %1195 = vmatpush1.bf16.msra.mxu0 0
        %1196 = vmatprep.subr.bf16.mxu0 0
        %1197 = vmatpush1.bf16.msra.mxu0 0
        %1198 = vmatprep.subr.bf16.mxu0 0
        %1199 = vmatpush1.bf16.msra.mxu0 0
        %1200 = vmatprep.subr.bf16.mxu0 0
        %1201 = vmatpush1.bf16.msra.mxu0 0
        %1202 = vmatprep.subr.bf16.mxu0 0
        %1203 = vmatpush1.bf16.msra.mxu0 0
        %1204 = vmatprep.subr.bf16.mxu0 0
        %1205 = vmatpush1.bf16.msra.mxu0 0
        %1206 = vmatprep.mubr.bf16.mxu0 0
        %1207 = vmatmul.mubr.bf16.gmra.mrb[0].mxu0 %v1169
        %v1208 = vpop.f32.mrb[0].mxu0
        %v1209 = vadd.f32 %v1163, %v1208
        %v1210 = vpop.f32.mrb[0].mxu0
        %v1211 = vpop.f32.mrb[0].mxu0
        %v1212 = vpop.f32.mrb[0].mxu0
        %1213 = vdwg.mxu0
        %s1214 = scalar_lea.vmem %s2, 32
        %v1215 = vld [vmem:[%s1214] sm:$0xf]
        %v1216 = vld [vmem:[%s1214 + $0x4] sm:$0xf]
        %v1217 = vld [vmem:[%s1214 + $0x8] sm:$0xf]
        %v1218 = vld [vmem:[%s1214 + $0xc] sm:$0xf]
        %v1223 = vunpack.c.l.b16 %v1215
        %v1224 = vunpack.c.l.b16 %v1216
        %v1225 = vunpack.c.l.b16 %v1217
        %v1226 = vunpack.c.l.b16 %v1218
        %v1227 = vpack.c.b16 %v1224, %v1223
        %v1228 = vpack.c.b16 %v1226, %v1225
        %1231 = vmatprep.subr.bf16.mxu0 0
        %1232 = vmatpush1.bf16.msra.mxu0 %v1227
        %1233 = vmatprep.subr.bf16.mxu0 0
        %1234 = vmatpush1.bf16.msra.mxu0 %v1228
        %1235 = vmatprep.subr.bf16.mxu0 0
        %1236 = vmatpush1.bf16.msra.mxu0 0
        %1237 = vmatprep.subr.bf16.mxu0 0
        %1238 = vmatpush1.bf16.msra.mxu0 0
        %1239 = vmatprep.subr.bf16.mxu0 0
        %1240 = vmatpush1.bf16.msra.mxu0 0
        %1241 = vmatprep.subr.bf16.mxu0 0
        %1242 = vmatpush1.bf16.msra.mxu0 0
        %1243 = vmatprep.subr.bf16.mxu0 0
        %1244 = vmatpush1.bf16.msra.mxu0 0
        %1245 = vmatprep.subr.bf16.mxu0 0
        %1246 = vmatpush1.bf16.msra.mxu0 0
        %1247 = vmatprep.subr.bf16.mxu0 0
        %1248 = vmatpush1.bf16.msra.mxu0 0
        %1249 = vmatprep.subr.bf16.mxu0 0
        %1250 = vmatpush1.bf16.msra.mxu0 0
        %1251 = vmatprep.subr.bf16.mxu0 0
        %1252 = vmatpush1.bf16.msra.mxu0 0
        %1253 = vmatprep.subr.bf16.mxu0 0
        %1254 = vmatpush1.bf16.msra.mxu0 0
        %1255 = vmatprep.subr.bf16.mxu0 0
        %1256 = vmatpush1.bf16.msra.mxu0 0
        %1257 = vmatprep.subr.bf16.mxu0 0
        %1258 = vmatpush1.bf16.msra.mxu0 0
        %1259 = vmatprep.subr.bf16.mxu0 0
        %1260 = vmatpush1.bf16.msra.mxu0 0
        %1261 = vmatprep.subr.bf16.mxu0 0
        %1262 = vmatpush1.bf16.msra.mxu0 0
        %1263 = vmatprep.mubr.bf16.mxu0 0
        %1264 = vmatmul.mubr.bf16.gmra.mrb[0].mxu0 %v563
        %v1265 = vpop.f32.mrb[0].mxu0
        %v1266 = vadd.f32 0.0, %v1265
        %v1267 = vpop.f32.mrb[0].mxu0
        %v1268 = vpop.f32.mrb[0].mxu0
        %v1269 = vpop.f32.mrb[0].mxu0
        %1270 = vdwg.mxu0
        %v1271 = vmul.f32 %v1266, 0.35355338
        %s1272 = scalar_lea.vmem %s3, 32
        %v1273 = vld [vmem:[%s1272] sm:$0xf]
        %v1274 = vld [vmem:[%s1272 + $0x4] sm:$0xf]
        %v1275 = vld [vmem:[%s1272 + $0x8] sm:$0xf]
        %v1276 = vld [vmem:[%s1272 + $0xc] sm:$0xf]
        %v1281 = vunpack.c.l.b16 %v1273
        %v1282 = vunpack.c.l.b16 %v1274
        %v1283 = vunpack.c.l.b16 %v1275
        %v1284 = vunpack.c.l.b16 %v1276
        %v1285 = vpack.c.b16 %v1282, %v1281
        %v1286 = vpack.c.b16 %v1284, %v1283
        %1289 = vmatprep.subr.bf16.mxu0 0
        %1290 = vmatpush1.bf16.msra.mxu0 %v1285
        %1291 = vmatprep.subr.bf16.mxu0 0
        %1292 = vmatpush1.bf16.msra.mxu0 %v1286
        %1293 = vmatprep.subr.bf16.mxu0 0
        %1294 = vmatpush1.bf16.msra.mxu0 0
        %1295 = vmatprep.subr.bf16.mxu0 0
        %1296 = vmatpush1.bf16.msra.mxu0 0
        %1297 = vmatprep.subr.bf16.mxu0 0
        %1298 = vmatpush1.bf16.msra.mxu0 0
        %1299 = vmatprep.subr.bf16.mxu0 0
        %1300 = vmatpush1.bf16.msra.mxu0 0
        %1301 = vmatprep.subr.bf16.mxu0 0
        %1302 = vmatpush1.bf16.msra.mxu0 0
        %1303 = vmatprep.subr.bf16.mxu0 0
        %1304 = vmatpush1.bf16.msra.mxu0 0
        %1305 = vmatprep.subr.bf16.mxu0 0
        %1306 = vmatpush1.bf16.msra.mxu0 0
        %1307 = vmatprep.subr.bf16.mxu0 0
        %1308 = vmatpush1.bf16.msra.mxu0 0
        %1309 = vmatprep.subr.bf16.mxu0 0
        %1310 = vmatpush1.bf16.msra.mxu0 0
        %1311 = vmatprep.subr.bf16.mxu0 0
        %1312 = vmatpush1.bf16.msra.mxu0 0
        %1313 = vmatprep.subr.bf16.mxu0 0
        %1314 = vmatpush1.bf16.msra.mxu0 0
        %1315 = vmatprep.subr.bf16.mxu0 0
        %1316 = vmatpush1.bf16.msra.mxu0 0
        %1317 = vmatprep.subr.bf16.mxu0 0
        %1318 = vmatpush1.bf16.msra.mxu0 0
        %1319 = vmatprep.subr.bf16.mxu0 0
        %1320 = vmatpush1.bf16.msra.mxu0 0
        %1321 = vmatprep.mubr.bf16.mxu0 0
        %1322 = vmatmul.mubr.bf16.gmra.mrb[0].mxu0 %v623
        %v1323 = vpop.f32.mrb[0].mxu0
        %v1324 = vadd.f32 0.0, %v1323
        %v1325 = vpop.f32.mrb[0].mxu0
        %v1326 = vpop.f32.mrb[0].mxu0
        %v1327 = vpop.f32.mrb[0].mxu0
        %1328 = vdwg.mxu0
        %s1329 = scalar_lea.vmem %s4, 32
        %v1330 = vld [vmem:[%s1329] sm:$0xf]
        %v1331 = vld [vmem:[%s1329 + $0x4] sm:$0xf]
        %v1332 = vld [vmem:[%s1329 + $0x8] sm:$0xf]
        %v1333 = vld [vmem:[%s1329 + $0xc] sm:$0xf]
        %v1338 = vunpack.c.l.b16 %v1330
        %v1339 = vunpack.c.l.b16 %v1331
        %v1340 = vunpack.c.l.b16 %v1332
        %v1341 = vunpack.c.l.b16 %v1333
        %v1342 = vpack.c.b16 %v1339, %v1338
        %v1343 = vpack.c.b16 %v1341, %v1340
        %1346 = vmatprep.subr.bf16.mxu0 0
        %1347 = vmatpush1.bf16.msra.mxu0 %v1342
        %1348 = vmatprep.subr.bf16.mxu0 0
        %1349 = vmatpush1.bf16.msra.mxu0 %v1343
        %1350 = vmatprep.subr.bf16.mxu0 0
        %1351 = vmatpush1.bf16.msra.mxu0 0
        %1352 = vmatprep.subr.bf16.mxu0 0
        %1353 = vmatpush1.bf16.msra.mxu0 0
        %1354 = vmatprep.subr.bf16.mxu0 0
        %1355 = vmatpush1.bf16.msra.mxu0 0
        %1356 = vmatprep.subr.bf16.mxu0 0
        %1357 = vmatpush1.bf16.msra.mxu0 0
        %1358 = vmatprep.subr.bf16.mxu0 0
        %1359 = vmatpush1.bf16.msra.mxu0 0
        %1360 = vmatprep.subr.bf16.mxu0 0
        %1361 = vmatpush1.bf16.msra.mxu0 0
        %1362 = vmatprep.subr.bf16.mxu0 0
        %1363 = vmatpush1.bf16.msra.mxu0 0
        %1364 = vmatprep.subr.bf16.mxu0 0
        %1365 = vmatpush1.bf16.msra.mxu0 0
        %1366 = vmatprep.subr.bf16.mxu0 0
        %1367 = vmatpush1.bf16.msra.mxu0 0
        %1368 = vmatprep.subr.bf16.mxu0 0
        %1369 = vmatpush1.bf16.msra.mxu0 0
        %1370 = vmatprep.subr.bf16.mxu0 0
        %1371 = vmatpush1.bf16.msra.mxu0 0
        %1372 = vmatprep.subr.bf16.mxu0 0
        %1373 = vmatpush1.bf16.msra.mxu0 0
        %1374 = vmatprep.subr.bf16.mxu0 0
        %1375 = vmatpush1.bf16.msra.mxu0 0
        %1376 = vmatprep.subr.bf16.mxu0 0
        %1377 = vmatpush1.bf16.msra.mxu0 0
        %1378 = vmatprep.mubr.bf16.mxu0 0
        %1379 = vmatmul.mubr.bf16.gmra.mrb[0].mxu0 %v623
        %v1380 = vpop.f32.mrb[0].mxu0
        %v1381 = vadd.f32 0.0, %v1380
        %v1382 = vpop.f32.mrb[0].mxu0
        %v1383 = vpop.f32.mrb[0].mxu0
        %v1384 = vpop.f32.mrb[0].mxu0
        %1385 = vdwg.mxu0
        %v1386 = vpack.c.bf16 %v1271, %v1271
        %v1387 = vpack.c.bf16 %v1324, %v1324
        %s1388 = scalar_lea.vmem %s522, 16
        %v1389 = vld [vmem:[%s1388] sm:$0xff]
        %v1391 = vsel %vm724, %v1386, 0
        %v1394 = vsel %vm724, %v1387, 0
        %1396 = vmatprep.subr.bf16.mxu0 0
        %1397 = vmatpush1.bf16.xpose.msra.mxu0 %v1394
        %1398 = vmatprep.subr.bf16.mxu0 0
        %1399 = vmatpush1.bf16.xpose.msra.mxu0 0
        %1400 = vmatprep.subr.bf16.mxu0 0
        %1401 = vmatpush1.bf16.xpose.msra.mxu0 0
        %1402 = vmatprep.subr.bf16.mxu0 0
        %1403 = vmatpush1.bf16.xpose.msra.mxu0 0
        %1404 = vmatprep.subr.bf16.mxu0 0
        %1405 = vmatpush1.bf16.xpose.msra.mxu0 0
        %1406 = vmatprep.subr.bf16.mxu0 0
        %1407 = vmatpush1.bf16.xpose.msra.mxu0 0
        %1408 = vmatprep.subr.bf16.mxu0 0
        %1409 = vmatpush1.bf16.xpose.msra.mxu0 0
        %1410 = vmatprep.subr.bf16.mxu0 0
        %1411 = vmatpush1.bf16.xpose.msra.mxu0 0
        %1412 = vmatprep.subr.bf16.mxu0 0
        %1413 = vmatpush1.bf16.xpose.msra.mxu0 0
        %1414 = vmatprep.subr.bf16.mxu0 0
        %1415 = vmatpush1.bf16.xpose.msra.mxu0 0
        %1416 = vmatprep.subr.bf16.mxu0 0
        %1417 = vmatpush1.bf16.xpose.msra.mxu0 0
        %1418 = vmatprep.subr.bf16.mxu0 0
        %1419 = vmatpush1.bf16.xpose.msra.mxu0 0
        %1420 = vmatprep.subr.bf16.mxu0 0
        %1421 = vmatpush1.bf16.xpose.msra.mxu0 0
        %1422 = vmatprep.subr.bf16.mxu0 0
        %1423 = vmatpush1.bf16.xpose.msra.mxu0 0
        %1424 = vmatprep.subr.bf16.mxu0 0
        %1425 = vmatpush1.bf16.xpose.msra.mxu0 0
        %1426 = vmatprep.subr.bf16.mxu0 0
        %1427 = vmatpush1.bf16.xpose.msra.mxu0 0
        %1428 = vmatprep.mubr.bf16.mxu0 0
        %1429 = vmatmul.mubr.bf16.gmra.mrb[0].mxu0 %v1391
        %v1430 = vpop.f32.mrb[0].mxu0
        %v1431 = vadd.f32 %v1389, %v1430
        %v1432 = vpop.f32.mrb[0].mxu0
        %v1433 = vpop.f32.mrb[0].mxu0
        %v1434 = vpop.f32.mrb[0].mxu0
        %1435 = vdwg.mxu0
        %v1436 = vsel %vm544, %v1431, -1e+09
        %v1437 = vsel %vm724, %v1436, -inf
        %1438 = vmax.xlane.f32.xlu0 %v1437
        %v1439 = vpop.xlane.xlu0 %1438
        %v1440 = vsub.f32 %v1436, %v1439
        %v1441 = vmul.f32 %v1440, 1.442695
        %v1442 = vpow.pop %v1441
        %v1443 = vsel %vm724, %v1442, 0.0
        %1444 = vadd.xlane.f32.xlu0 %v1443
        %v1445 = vpop.xlane.xlu0 %1444
        %v1446 = vrcp.pop %v1445
        %v1447 = vmul.f32 %v1442, %v1446
        %s1448 = scalar_lea.vmem %s497, 16 [#allocation4]
        %1449 = vst.msk [vmem:[%s1448] sm:$0xff] %vm724, %v1447
        %v1450 = vpack.c.bf16 %v1447, %v1447
        %v1451 = vpack.c.bf16 %v1381, %v1381
        %v1453 = vsel %vm724, %v1450, 0
        %v1456 = vsel %vm789, %v1451, 0
        %1458 = vmatprep.subr.bf16.mxu0 0
        %1459 = vmatpush1.bf16.msra.mxu0 %v1456
        %1460 = vmatprep.subr.bf16.mxu0 0
        %1461 = vmatpush1.bf16.msra.mxu0 0
        %1462 = vmatprep.subr.bf16.mxu0 0
        %1463 = vmatpush1.bf16.msra.mxu0 0
        %1464 = vmatprep.subr.bf16.mxu0 0
        %1465 = vmatpush1.bf16.msra.mxu0 0
        %1466 = vmatprep.subr.bf16.mxu0 0
        %1467 = vmatpush1.bf16.msra.mxu0 0
        %1468 = vmatprep.subr.bf16.mxu0 0
        %1469 = vmatpush1.bf16.msra.mxu0 0
        %1470 = vmatprep.subr.bf16.mxu0 0
        %1471 = vmatpush1.bf16.msra.mxu0 0
        %1472 = vmatprep.subr.bf16.mxu0 0
        %1473 = vmatpush1.bf16.msra.mxu0 0
        %1474 = vmatprep.subr.bf16.mxu0 0
        %1475 = vmatpush1.bf16.msra.mxu0 0
        %1476 = vmatprep.subr.bf16.mxu0 0
        %1477 = vmatpush1.bf16.msra.mxu0 0
        %1478 = vmatprep.subr.bf16.mxu0 0
        %1479 = vmatpush1.bf16.msra.mxu0 0
        %1480 = vmatprep.subr.bf16.mxu0 0
        %1481 = vmatpush1.bf16.msra.mxu0 0
        %1482 = vmatprep.subr.bf16.mxu0 0
        %1483 = vmatpush1.bf16.msra.mxu0 0
        %1484 = vmatprep.subr.bf16.mxu0 0
        %1485 = vmatpush1.bf16.msra.mxu0 0
        %1486 = vmatprep.subr.bf16.mxu0 0
        %1487 = vmatpush1.bf16.msra.mxu0 0
        %1488 = vmatprep.subr.bf16.mxu0 0
        %1489 = vmatpush1.bf16.msra.mxu0 0
        %1490 = vmatprep.mubr.bf16.mxu0 0
        %1491 = vmatmul.mubr.bf16.gmra.mrb[0].mxu0 %v1453
        %v1492 = vpop.f32.mrb[0].mxu0
        %v1493 = vadd.f32 0.0, %v1492
        %v1494 = vpop.f32.mrb[0].mxu0
        %v1495 = vpop.f32.mrb[0].mxu0
        %v1496 = vpop.f32.mrb[0].mxu0
        %1497 = vdwg.mxu0
        %v1498 = vpack.c.bf16 %v1493, %v1493
        %s1499 = scalar_lea.vmem %s5, 8
        %v1500 = vld [vmem:[%s1499] sm:$0xf]
        %v1502 = vsel %vm724, %v1498, 0
        %v1505 = vsel %vm789, %v1500, 0
        %1507 = vmatprep.subr.bf16.mxu0 0
        %1508 = vmatpush1.bf16.msra.mxu0 %v1505
        %1509 = vmatprep.subr.bf16.mxu0 0
        %1510 = vmatpush1.bf16.msra.mxu0 0
        %1511 = vmatprep.subr.bf16.mxu0 0
        %1512 = vmatpush1.bf16.msra.mxu0 0
        %1513 = vmatprep.subr.bf16.mxu0 0
        %1514 = vmatpush1.bf16.msra.mxu0 0
        %1515 = vmatprep.subr.bf16.mxu0 0
        %1516 = vmatpush1.bf16.msra.mxu0 0
        %1517 = vmatprep.subr.bf16.mxu0 0
        %1518 = vmatpush1.bf16.msra.mxu0 0
        %1519 = vmatprep.subr.bf16.mxu0 0
        %1520 = vmatpush1.bf16.msra.mxu0 0
        %1521 = vmatprep.subr.bf16.mxu0 0
        %1522 = vmatpush1.bf16.msra.mxu0 0
        %1523 = vmatprep.subr.bf16.mxu0 0
        %1524 = vmatpush1.bf16.msra.mxu0 0
        %1525 = vmatprep.subr.bf16.mxu0 0
        %1526 = vmatpush1.bf16.msra.mxu0 0
        %1527 = vmatprep.subr.bf16.mxu0 0
        %1528 = vmatpush1.bf16.msra.mxu0 0
        %1529 = vmatprep.subr.bf16.mxu0 0
        %1530 = vmatpush1.bf16.msra.mxu0 0
        %1531 = vmatprep.subr.bf16.mxu0 0
        %1532 = vmatpush1.bf16.msra.mxu0 0
        %1533 = vmatprep.subr.bf16.mxu0 0
        %1534 = vmatpush1.bf16.msra.mxu0 0
        %1535 = vmatprep.subr.bf16.mxu0 0
        %1536 = vmatpush1.bf16.msra.mxu0 0
        %1537 = vmatprep.subr.bf16.mxu0 0
        %1538 = vmatpush1.bf16.msra.mxu0 0
        %1539 = vmatprep.mubr.bf16.mxu0 0
        %1540 = vmatmul.mubr.bf16.gmra.mrb[0].mxu0 %v1502
        %v1541 = vpop.f32.mrb[0].mxu0
        %v1542 = vadd.f32 0.0, %v1541
        %v1543 = vpop.f32.mrb[0].mxu0
        %v1544 = vpop.f32.mrb[0].mxu0
        %v1545 = vpop.f32.mrb[0].mxu0
        %1546 = vdwg.mxu0
        %v1547 = vadd.f32 %v1209, %v1542
        %s1548 = scalar_lea.vmem %s2, 48
        %v1549 = vld [vmem:[%s1548] sm:$0xf]
        %v1550 = vld [vmem:[%s1548 + $0x4] sm:$0xf]
        %v1551 = vld [vmem:[%s1548 + $0x8] sm:$0xf]
        %v1552 = vld [vmem:[%s1548 + $0xc] sm:$0xf]
        %v1557 = vunpack.c.l.b16 %v1549
        %v1558 = vunpack.c.l.b16 %v1550
        %v1559 = vunpack.c.l.b16 %v1551
        %v1560 = vunpack.c.l.b16 %v1552
        %v1561 = vpack.c.b16 %v1558, %v1557
        %v1562 = vpack.c.b16 %v1560, %v1559
        %1565 = vmatprep.subr.bf16.mxu0 0
        %1566 = vmatpush1.bf16.msra.mxu0 %v1561
        %1567 = vmatprep.subr.bf16.mxu0 0
        %1568 = vmatpush1.bf16.msra.mxu0 %v1562
        %1569 = vmatprep.subr.bf16.mxu0 0
        %1570 = vmatpush1.bf16.msra.mxu0 0
        %1571 = vmatprep.subr.bf16.mxu0 0
        %1572 = vmatpush1.bf16.msra.mxu0 0
        %1573 = vmatprep.subr.bf16.mxu0 0
        %1574 = vmatpush1.bf16.msra.mxu0 0
        %1575 = vmatprep.subr.bf16.mxu0 0
        %1576 = vmatpush1.bf16.msra.mxu0 0
        %1577 = vmatprep.subr.bf16.mxu0 0
        %1578 = vmatpush1.bf16.msra.mxu0 0
        %1579 = vmatprep.subr.bf16.mxu0 0
        %1580 = vmatpush1.bf16.msra.mxu0 0
        %1581 = vmatprep.subr.bf16.mxu0 0
        %1582 = vmatpush1.bf16.msra.mxu0 0
        %1583 = vmatprep.subr.bf16.mxu0 0
        %1584 = vmatpush1.bf16.msra.mxu0 0
        %1585 = vmatprep.subr.bf16.mxu0 0
        %1586 = vmatpush1.bf16.msra.mxu0 0
        %1587 = vmatprep.subr.bf16.mxu0 0
        %1588 = vmatpush1.bf16.msra.mxu0 0
        %1589 = vmatprep.subr.bf16.mxu0 0
        %1590 = vmatpush1.bf16.msra.mxu0 0
        %1591 = vmatprep.subr.bf16.mxu0 0
        %1592 = vmatpush1.bf16.msra.mxu0 0
        %1593 = vmatprep.subr.bf16.mxu0 0
        %1594 = vmatpush1.bf16.msra.mxu0 0
        %1595 = vmatprep.subr.bf16.mxu0 0
        %1596 = vmatpush1.bf16.msra.mxu0 0
        %1597 = vmatprep.mubr.bf16.mxu0 0
        %1598 = vmatmul.mubr.bf16.gmra.mrb[0].mxu0 %v563
        %v1599 = vpop.f32.mrb[0].mxu0
        %v1600 = vadd.f32 0.0, %v1599
        %v1601 = vpop.f32.mrb[0].mxu0
        %v1602 = vpop.f32.mrb[0].mxu0
        %v1603 = vpop.f32.mrb[0].mxu0
        %1604 = vdwg.mxu0
        %v1605 = vmul.f32 %v1600, 0.35355338
        %s1606 = scalar_lea.vmem %s3, 48
        %v1607 = vld [vmem:[%s1606] sm:$0xf]
        %v1608 = vld [vmem:[%s1606 + $0x4] sm:$0xf]
        %v1609 = vld [vmem:[%s1606 + $0x8] sm:$0xf]
        %v1610 = vld [vmem:[%s1606 + $0xc] sm:$0xf]
        %v1615 = vunpack.c.l.b16 %v1607
        %v1616 = vunpack.c.l.b16 %v1608
        %v1617 = vunpack.c.l.b16 %v1609
        %v1618 = vunpack.c.l.b16 %v1610
        %v1619 = vpack.c.b16 %v1616, %v1615
        %v1620 = vpack.c.b16 %v1618, %v1617
        %1623 = vmatprep.subr.bf16.mxu0 0
        %1624 = vmatpush1.bf16.msra.mxu0 %v1619
        %1625 = vmatprep.subr.bf16.mxu0 0
        %1626 = vmatpush1.bf16.msra.mxu0 %v1620
        %1627 = vmatprep.subr.bf16.mxu0 0
        %1628 = vmatpush1.bf16.msra.mxu0 0
        %1629 = vmatprep.subr.bf16.mxu0 0
        %1630 = vmatpush1.bf16.msra.mxu0 0
        %1631 = vmatprep.subr.bf16.mxu0 0
        %1632 = vmatpush1.bf16.msra.mxu0 0
        %1633 = vmatprep.subr.bf16.mxu0 0
        %1634 = vmatpush1.bf16.msra.mxu0 0
        %1635 = vmatprep.subr.bf16.mxu0 0
        %1636 = vmatpush1.bf16.msra.mxu0 0
        %1637 = vmatprep.subr.bf16.mxu0 0
        %1638 = vmatpush1.bf16.msra.mxu0 0
        %1639 = vmatprep.subr.bf16.mxu0 0
        %1640 = vmatpush1.bf16.msra.mxu0 0
        %1641 = vmatprep.subr.bf16.mxu0 0
        %1642 = vmatpush1.bf16.msra.mxu0 0
        %1643 = vmatprep.subr.bf16.mxu0 0
        %1644 = vmatpush1.bf16.msra.mxu0 0
        %1645 = vmatprep.subr.bf16.mxu0 0
        %1646 = vmatpush1.bf16.msra.mxu0 0
        %1647 = vmatprep.subr.bf16.mxu0 0
        %1648 = vmatpush1.bf16.msra.mxu0 0
        %1649 = vmatprep.subr.bf16.mxu0 0
        %1650 = vmatpush1.bf16.msra.mxu0 0
        %1651 = vmatprep.subr.bf16.mxu0 0
        %1652 = vmatpush1.bf16.msra.mxu0 0
        %1653 = vmatprep.subr.bf16.mxu0 0
        %1654 = vmatpush1.bf16.msra.mxu0 0
        %1655 = vmatprep.mubr.bf16.mxu0 0
        %1656 = vmatmul.mubr.bf16.gmra.mrb[0].mxu0 %v623
        %v1657 = vpop.f32.mrb[0].mxu0
        %v1658 = vadd.f32 0.0, %v1657
        %v1659 = vpop.f32.mrb[0].mxu0
        %v1660 = vpop.f32.mrb[0].mxu0
        %v1661 = vpop.f32.mrb[0].mxu0
        %1662 = vdwg.mxu0
        %s1663 = scalar_lea.vmem %s4, 48
        %v1664 = vld [vmem:[%s1663] sm:$0xf]
        %v1665 = vld [vmem:[%s1663 + $0x4] sm:$0xf]
        %v1666 = vld [vmem:[%s1663 + $0x8] sm:$0xf]
        %v1667 = vld [vmem:[%s1663 + $0xc] sm:$0xf]
        %v1672 = vunpack.c.l.b16 %v1664
        %v1673 = vunpack.c.l.b16 %v1665
        %v1674 = vunpack.c.l.b16 %v1666
        %v1675 = vunpack.c.l.b16 %v1667
        %v1676 = vpack.c.b16 %v1673, %v1672
        %v1677 = vpack.c.b16 %v1675, %v1674
        %1680 = vmatprep.subr.bf16.mxu0 0
        %1681 = vmatpush1.bf16.msra.mxu0 %v1676
        %1682 = vmatprep.subr.bf16.mxu0 0
        %1683 = vmatpush1.bf16.msra.mxu0 %v1677
        %1684 = vmatprep.subr.bf16.mxu0 0
        %1685 = vmatpush1.bf16.msra.mxu0 0
        %1686 = vmatprep.subr.bf16.mxu0 0
        %1687 = vmatpush1.bf16.msra.mxu0 0
        %1688 = vmatprep.subr.bf16.mxu0 0
        %1689 = vmatpush1.bf16.msra.mxu0 0
        %1690 = vmatprep.subr.bf16.mxu0 0
        %1691 = vmatpush1.bf16.msra.mxu0 0
        %1692 = vmatprep.subr.bf16.mxu0 0
        %1693 = vmatpush1.bf16.msra.mxu0 0
        %1694 = vmatprep.subr.bf16.mxu0 0
        %1695 = vmatpush1.bf16.msra.mxu0 0
        %1696 = vmatprep.subr.bf16.mxu0 0
        %1697 = vmatpush1.bf16.msra.mxu0 0
        %1698 = vmatprep.subr.bf16.mxu0 0
        %1699 = vmatpush1.bf16.msra.mxu0 0
        %1700 = vmatprep.subr.bf16.mxu0 0
        %1701 = vmatpush1.bf16.msra.mxu0 0
        %1702 = vmatprep.subr.bf16.mxu0 0
        %1703 = vmatpush1.bf16.msra.mxu0 0
        %1704 = vmatprep.subr.bf16.mxu0 0
        %1705 = vmatpush1.bf16.msra.mxu0 0
        %1706 = vmatprep.subr.bf16.mxu0 0
        %1707 = vmatpush1.bf16.msra.mxu0 0
        %1708 = vmatprep.subr.bf16.mxu0 0
        %1709 = vmatpush1.bf16.msra.mxu0 0
        %1710 = vmatprep.subr.bf16.mxu0 0
        %1711 = vmatpush1.bf16.msra.mxu0 0
        %1712 = vmatprep.mubr.bf16.mxu0 0
        %1713 = vmatmul.mubr.bf16.gmra.mrb[0].mxu0 %v623
        %v1714 = vpop.f32.mrb[0].mxu0
        %v1715 = vadd.f32 0.0, %v1714
        %v1716 = vpop.f32.mrb[0].mxu0
        %v1717 = vpop.f32.mrb[0].mxu0
        %v1718 = vpop.f32.mrb[0].mxu0
        %1719 = vdwg.mxu0
        %v1720 = vpack.c.bf16 %v1605, %v1605
        %v1721 = vpack.c.bf16 %v1658, %v1658
        %s1722 = scalar_lea.vmem %s522, 24
        %v1723 = vld [vmem:[%s1722] sm:$0xff]
        %v1725 = vsel %vm724, %v1720, 0
        %v1728 = vsel %vm724, %v1721, 0
        %1730 = vmatprep.subr.bf16.mxu0 0
        %1731 = vmatpush1.bf16.xpose.msra.mxu0 %v1728
        %1732 = vmatprep.subr.bf16.mxu0 0
        %1733 = vmatpush1.bf16.xpose.msra.mxu0 0
        %1734 = vmatprep.subr.bf16.mxu0 0
        %1735 = vmatpush1.bf16.xpose.msra.mxu0 0
        %1736 = vmatprep.subr.bf16.mxu0 0
        %1737 = vmatpush1.bf16.xpose.msra.mxu0 0
        %1738 = vmatprep.subr.bf16.mxu0 0
        %1739 = vmatpush1.bf16.xpose.msra.mxu0 0
        %1740 = vmatprep.subr.bf16.mxu0 0
        %1741 = vmatpush1.bf16.xpose.msra.mxu0 0
        %1742 = vmatprep.subr.bf16.mxu0 0
        %1743 = vmatpush1.bf16.xpose.msra.mxu0 0
        %1744 = vmatprep.subr.bf16.mxu0 0
        %1745 = vmatpush1.bf16.xpose.msra.mxu0 0
        %1746 = vmatprep.subr.bf16.mxu0 0
        %1747 = vmatpush1.bf16.xpose.msra.mxu0 0
        %1748 = vmatprep.subr.bf16.mxu0 0
        %1749 = vmatpush1.bf16.xpose.msra.mxu0 0
        %1750 = vmatprep.subr.bf16.mxu0 0
        %1751 = vmatpush1.bf16.xpose.msra.mxu0 0
        %1752 = vmatprep.subr.bf16.mxu0 0
        %1753 = vmatpush1.bf16.xpose.msra.mxu0 0
        %1754 = vmatprep.subr.bf16.mxu0 0
        %1755 = vmatpush1.bf16.xpose.msra.mxu0 0
        %1756 = vmatprep.subr.bf16.mxu0 0
        %1757 = vmatpush1.bf16.xpose.msra.mxu0 0
        %1758 = vmatprep.subr.bf16.mxu0 0
        %1759 = vmatpush1.bf16.xpose.msra.mxu0 0
        %1760 = vmatprep.subr.bf16.mxu0 0
        %1761 = vmatpush1.bf16.xpose.msra.mxu0 0
        %1762 = vmatprep.mubr.bf16.mxu0 0
        %1763 = vmatmul.mubr.bf16.gmra.mrb[0].mxu0 %v1725
        %v1764 = vpop.f32.mrb[0].mxu0
        %v1765 = vadd.f32 %v1723, %v1764
        %v1766 = vpop.f32.mrb[0].mxu0
        %v1767 = vpop.f32.mrb[0].mxu0
        %v1768 = vpop.f32.mrb[0].mxu0
        %1769 = vdwg.mxu0
        %v1770 = vsel %vm544, %v1765, -1e+09
        %v1771 = vsel %vm724, %v1770, -inf
        %1772 = vmax.xlane.f32.xlu0 %v1771
        %v1773 = vpop.xlane.xlu0 %1772
        %v1774 = vsub.f32 %v1770, %v1773
        %v1775 = vmul.f32 %v1774, 1.442695
        %v1776 = vpow.pop %v1775
        %v1777 = vsel %vm724, %v1776, 0.0
        %1778 = vadd.xlane.f32.xlu0 %v1777
        %v1779 = vpop.xlane.xlu0 %1778
        %v1780 = vrcp.pop %v1779
        %v1781 = vmul.f32 %v1776, %v1780
        %s1782 = scalar_lea.vmem %s497, 24 [#allocation4]
        %1783 = vst.msk [vmem:[%s1782] sm:$0xff] %vm724, %v1781
        %v1784 = vpack.c.bf16 %v1781, %v1781
        %v1785 = vpack.c.bf16 %v1715, %v1715
        %v1787 = vsel %vm724, %v1784, 0
        %v1790 = vsel %vm789, %v1785, 0
        %1792 = vmatprep.subr.bf16.mxu0 0
        %1793 = vmatpush1.bf16.msra.mxu0 %v1790
        %1794 = vmatprep.subr.bf16.mxu0 0
        %1795 = vmatpush1.bf16.msra.mxu0 0
        %1796 = vmatprep.subr.bf16.mxu0 0
        %1797 = vmatpush1.bf16.msra.mxu0 0
        %1798 = vmatprep.subr.bf16.mxu0 0
        %1799 = vmatpush1.bf16.msra.mxu0 0
        %1800 = vmatprep.subr.bf16.mxu0 0
        %1801 = vmatpush1.bf16.msra.mxu0 0
        %1802 = vmatprep.subr.bf16.mxu0 0
        %1803 = vmatpush1.bf16.msra.mxu0 0
        %1804 = vmatprep.subr.bf16.mxu0 0
        %1805 = vmatpush1.bf16.msra.mxu0 0
        %1806 = vmatprep.subr.bf16.mxu0 0
        %1807 = vmatpush1.bf16.msra.mxu0 0
        %1808 = vmatprep.subr.bf16.mxu0 0
        %1809 = vmatpush1.bf16.msra.mxu0 0
        %1810 = vmatprep.subr.bf16.mxu0 0
        %1811 = vmatpush1.bf16.msra.mxu0 0
        %1812 = vmatprep.subr.bf16.mxu0 0
        %1813 = vmatpush1.bf16.msra.mxu0 0
        %1814 = vmatprep.subr.bf16.mxu0 0
        %1815 = vmatpush1.bf16.msra.mxu0 0
        %1816 = vmatprep.subr.bf16.mxu0 0
        %1817 = vmatpush1.bf16.msra.mxu0 0
        %1818 = vmatprep.subr.bf16.mxu0 0
        %1819 = vmatpush1.bf16.msra.mxu0 0
        %1820 = vmatprep.subr.bf16.mxu0 0
        %1821 = vmatpush1.bf16.msra.mxu0 0
        %1822 = vmatprep.subr.bf16.mxu0 0
        %1823 = vmatpush1.bf16.msra.mxu0 0
        %1824 = vmatprep.mubr.bf16.mxu0 0
        %1825 = vmatmul.mubr.bf16.gmra.mrb[0].mxu0 %v1787
        %v1826 = vpop.f32.mrb[0].mxu0
        %v1827 = vadd.f32 0.0, %v1826
        %v1828 = vpop.f32.mrb[0].mxu0
        %v1829 = vpop.f32.mrb[0].mxu0
        %v1830 = vpop.f32.mrb[0].mxu0
        %1831 = vdwg.mxu0
        %v1832 = vpack.c.bf16 %v1827, %v1827
        %s1833 = scalar_lea.vmem %s5, 12
        %v1834 = vld [vmem:[%s1833] sm:$0xf]
        %v1836 = vsel %vm724, %v1832, 0
        %v1839 = vsel %vm789, %v1834, 0
        %1841 = vmatprep.subr.bf16.mxu0 0
        %1842 = vmatpush1.bf16.msra.mxu0 %v1839
        %1843 = vmatprep.subr.bf16.mxu0 0
        %1844 = vmatpush1.bf16.msra.mxu0 0
        %1845 = vmatprep.subr.bf16.mxu0 0
        %1846 = vmatpush1.bf16.msra.mxu0 0
        %1847 = vmatprep.subr.bf16.mxu0 0
        %1848 = vmatpush1.bf16.msra.mxu0 0
        %1849 = vmatprep.subr.bf16.mxu0 0
        %1850 = vmatpush1.bf16.msra.mxu0 0
        %1851 = vmatprep.subr.bf16.mxu0 0
        %1852 = vmatpush1.bf16.msra.mxu0 0
        %1853 = vmatprep.subr.bf16.mxu0 0
        %1854 = vmatpush1.bf16.msra.mxu0 0
        %1855 = vmatprep.subr.bf16.mxu0 0
        %1856 = vmatpush1.bf16.msra.mxu0 0
        %1857 = vmatprep.subr.bf16.mxu0 0
        %1858 = vmatpush1.bf16.msra.mxu0 0
        %1859 = vmatprep.subr.bf16.mxu0 0
        %1860 = vmatpush1.bf16.msra.mxu0 0
        %1861 = vmatprep.subr.bf16.mxu0 0
        %1862 = vmatpush1.bf16.msra.mxu0 0
        %1863 = vmatprep.subr.bf16.mxu0 0
        %1864 = vmatpush1.bf16.msra.mxu0 0
        %1865 = vmatprep.subr.bf16.mxu0 0
        %1866 = vmatpush1.bf16.msra.mxu0 0
        %1867 = vmatprep.subr.bf16.mxu0 0
        %1868 = vmatpush1.bf16.msra.mxu0 0
        %1869 = vmatprep.subr.bf16.mxu0 0
        %1870 = vmatpush1.bf16.msra.mxu0 0
        %1871 = vmatprep.subr.bf16.mxu0 0
        %1872 = vmatpush1.bf16.msra.mxu0 0
        %1873 = vmatprep.mubr.bf16.mxu0 0
        %1874 = vmatmul.mubr.bf16.gmra.mrb[0].mxu0 %v1836
        %v1875 = vpop.f32.mrb[0].mxu0
        %v1876 = vadd.f32 0.0, %v1875
        %v1877 = vpop.f32.mrb[0].mxu0
        %v1878 = vpop.f32.mrb[0].mxu0
        %v1879 = vpop.f32.mrb[0].mxu0
        %1880 = vdwg.mxu0
        %v1881 = vadd.f32 %v1547, %v1876
        %v1882 = vadd.f32 %v1881, %v524
        %v1883 = vsel %vm561, %v1882, 0.0
        %1884 = vadd.xlane.f32.xlu0 %v1883
        %v1885 = vpop.xlane.xlu0 %1884
        %v1886 = vrcp.pop 32.0
        %v1887 = vmul.f32 %v1885, %v1886
        %v1888 = vsub.f32 %v1882, %v1887
        %v1889 = vmul.f32 %v1888, %v1888
        %v1890 = vsel %vm561, %v1889, 0.0
        %1891 = vadd.xlane.f32.xlu0 %v1890
        %v1892 = vpop.xlane.xlu0 %1891
        %v1893 = vmul.f32 %v1892, %v1886
        %v1894 = vadd.f32 %v1893, 1e-06
        %v1895 = vrsqrt.pop %v1894
        %v1896 = vmul.f32 %v1888, %v1895
        %v1897 = vld [vmem:[%s6] sm:$0x1]
        %v1899 = vlaneseq
        %v1900 = vshrl.u32 %v1899, 7
        %v1901 = vsub.s32 0, %v1900
        %v1902 = vrot.slane %v1897, %v1901
        %v1904 = vmul.f32 %v1896, %v1902
        %v1905 = vld [vmem:[%s7] sm:$0x1]
        %v1907 = vlaneseq
        %v1908 = vshrl.u32 %v1907, 7
        %v1909 = vsub.s32 0, %v1908
        %v1910 = vrot.slane %v1905, %v1909
        %v1912 = vadd.f32 %v1904, %v1910
        %v1913 = vld [vmem:[%s518] sm:$0xff]
        %vm1914 = vcmp.ne.f32.partialorder %v1913, 0.0
        %v1915 = vsel %vm1914, 1, 0
        %1916 = vset.pattern.permute.xlu0 0
        %1917 = vperm.xlu0 %1916, %v1915
        %v1918 = vpop.permute.xlu0 %1917
        %vm1919 = vcmp.eq.s32.totalorder %v1918, 1
        %v1920 = vsel %vm1919, 0.0, %v1912
        %1921 = vst.msk [vmem:[%s490] sm:$0xff] %vm561, %v1920
        %s1922 = sand.u32 %s312, 1
        %s1923 = scalar_lea.sflag [#allocation3], %s1922
        %s1924 = sand.u32 %s312, 1
        %s1925 = smul.addr %s1924, 8
        %s1926 = scalar_lea.vmem [#allocation2], %s1925
        %s1927 = sand.u32 %s340, 1
        %s1928 = scalar_lea.sflag [#allocation5], %s1927
        %s1929 = sand.u32 %s340, 1
        %s1930 = smul.addr %s1929, 32
        %s1931 = scalar_lea.vmem [#allocation4], %s1930
        // Predicated region
        $region65: #{tpu_custom_call.1} parent=63 // pred_check
          %p1932 = pneg %p322
        $region66: #{tpu_custom_call.1} parent=63 // pred_check_branch
          %1934 = sbr.rel (%p1932) target = $region68
        $region67: #{tpu_custom_call.1} parent=63 // pred_region
          %s1936 = ssub.s32 128, 128
          %1937 = vsyncadd %s1923, %s1936
          %s1938 = sadd.s32 %s35, %s34
          %s1939 = smul.addr %s1938, 128
          %s1940 = scalar_lea.hbm %s11, %s1939
          %s1942 = sshll.u32 %s1926, 4
          %s1943 = int_to_ptr.vmem [resolvable:$true] %s1942
          %1945 = dma.vmem_to_hbm [thread:$0]  %s1943, 128, %s1940, %s1923
        $region68: #{tpu_custom_call.1} parent=63 // pred_fallthru
          _
        // Predicated region
        $region69: #{tpu_custom_call.1} parent=63 // pred_check
          %p1946 = pneg %p350
        $region70: #{tpu_custom_call.1} parent=63 // pred_check_branch
          %1948 = sbr.rel (%p1946) target = $region72
        $region71: #{tpu_custom_call.1} parent=63 // pred_region
          %s1950 = ssub.s32 512, 512
          %1951 = vsyncadd %s1928, %s1950
          %s1952 = smul.addr %s34, 4
          %s1953 = sadd.s32 %s35, %s1952
          %s1954 = smul.addr %s1953, 128
          %s1955 = scalar_lea.hbm %s12, %s1954
          %s1956 = sshll.u32 %s1931, 4
          %s1957 = int_to_ptr.vmem [resolvable:$true] %s1956
          %1962 = dma.vmem_to_hbm [thread:$0]  %s1957, 512, %s1955, %s1928, 128, 128, 8
        $region72: #{tpu_custom_call.1} parent=63 // pred_fallthru
          _
      $region64: #{tpu_custom_call.1} parent=5 // pred_fallthru
        _
      %p1963 = scmp.le.s32.totalorder 2, %s25
      // Predicated region
      $region73: #{tpu_custom_call.1} parent=5 // pred_check
        %p1964 = pneg %p1963
      $region74: #{tpu_custom_call.1} parent=5 // pred_check_branch
        %1966 = sbr.rel (%p1964) target = $region76
      $region75: #{tpu_custom_call.1} parent=5 // pred_region
        %s1967 = ssub.s32 %s25, 2
        // Predicated region
        $region77: #{tpu_custom_call.1} parent=75 // pred_check
          %p1968 = pneg %p328
        $region78: #{tpu_custom_call.1} parent=75 // pred_check_branch
          %1970 = sbr.rel (%p1968) target = $region80
        $region79: #{tpu_custom_call.1} parent=75 // pred_region
          %s1971 = sand.u32 %s313, 1
          %s1972 = scalar_lea.sflag [#allocation3], %s1971
          %s1973 = sand.u32 %s313, 1
          %s1974 = smul.addr %s1973, 8
          %s1975 = scalar_lea.vmem [#allocation2], %s1974
          %1976 = dma.done %s1972, 128
        $region80: #{tpu_custom_call.1} parent=75 // pred_fallthru
          _
        // Predicated region
        $region81: #{tpu_custom_call.1} parent=75 // pred_check
          %p1977 = pneg %p356
        $region82: #{tpu_custom_call.1} parent=75 // pred_check_branch
          %1979 = sbr.rel (%p1977) target = $region84
        $region83: #{tpu_custom_call.1} parent=75 // pred_region
          %s1980 = sand.u32 %s341, 1
          %s1981 = scalar_lea.sflag [#allocation5], %s1980
          %s1982 = sand.u32 %s341, 1
          %s1983 = smul.addr %s1982, 32
          %s1984 = scalar_lea.vmem [#allocation4], %s1983
          %1985 = dma.done %s1981, 512
        $region84: #{tpu_custom_call.1} parent=75 // pred_fallthru
          _
      $region76: #{tpu_custom_call.1} parent=5 // pred_fallthru
        _
    $region6: #{tpu_custom_call.1} parent=1 // loop_footer
      %s29 = sadd.s32 1, %s25
    $region7: #{tpu_custom_call.1} parent=1 // loop_footer_branch
      %24 = sbr.rel target = $region3
    $region8: #{tpu_custom_call.1} parent=1 // loop_exit
      _
    %1986 = vsyncpa [#allocation3], 1
    %s1987 = scalar_lea.sflag [#allocation3], 1
    %1988 = vsyncpa %s1987, 1
    %1989 = vsyncpa [#allocation5], 1
    %s1990 = scalar_lea.sflag [#allocation5], 1
    %1991 = vsyncpa %s1990, 1

</llo_original>
